<compile_context>
chip_gen: v5e
topology: v5e:2x2
jax: 0.10.0
libtpu: 0.0.40
codegen_flags: <defaults>
</compile_context>

<pallas_src>
import jax
import jax.numpy as jnp
import numpy as np
from jax import lax
from jax.experimental import pallas as pl
from jax.experimental.pallas import tpu as pltpu

# ----- small, module-consistent config -----
LATENT = 32      # latent_dim
LAYER = 32       # layer_size
NODES = 64       # num_nodes
RANK = 16        # rank
VIEWS = 4        # num_views
BATCH = 2
EPS = 1e-5
DTYPE = jnp.float32


# ---------------------------------------------------------------------------
# Fused kernel: shared MLP + heads + RESCAL bilinear, one batch row per step
# ---------------------------------------------------------------------------
def rescal_fused_kernel(noise_ref,
                        w1, b1, w2, b2, w3, b3,
                        wh1, bh1, wa2, ba2, wr2, br2,
                        o_ref,
                        at_scr, rc_scr):
    f = pl.program_id(0)
    x = noise_ref[pl.ds(f, 1), :]                                     # (1, LATENT)

    # ---- shared MLP (BatchNorms folded into w2/b2 and w3/b3) ----
    h = jnp.maximum(jnp.dot(x, w1[...], preferred_element_type=jnp.float32) + b1[...], 0.0)
    h = jnp.maximum(jnp.dot(h, w2[...], preferred_element_type=jnp.float32) + b2[...], 0.0)
    s = jnp.maximum(jnp.dot(h, w3[...], preferred_element_type=jnp.float32) + b3[...], 0.0)   # (1, 4*LAYER)

    # ---- first layers of both heads fused into one matmul ----
    hh = jnp.maximum(jnp.dot(s, wh1[...], preferred_element_type=jnp.float32) + bh1[...], 0.0)  # (1, 4*LAYER)
    ha = hh[:, :2 * LAYER]
    hr = hh[:, 2 * LAYER:]

    # ---- second head layers (weight columns pre-permuted at trace time) ----
    # sa row b (width NODES)       : A[:, b]                        (node index on lanes)
    # sr row b (width VIEWS*RANK)  : [R_0[b,:] R_1[b,:] ... ]       (view-major, rank on lanes)
    sa = jax.nn.sigmoid(jnp.dot(ha, wa2[...], preferred_element_type=jnp.float32) + ba2[...])  # (1, RANK*NODES)
    sr = jax.nn.sigmoid(jnp.dot(hr, wr2[...], preferred_element_type=jnp.float32) + br2[...])  # (1, RANK*VIEWS*RANK)

    # ---- scatter the flat head outputs into 2-D VMEM scratch tiles ----
    for b in range(RANK):
        at_scr[pl.ds(b, 1), :] = sa[:, b * NODES:(b + 1) * NODES]
        rc_scr[pl.ds(b, 1), :] = sr[:, b * (VIEWS * RANK):(b + 1) * (VIEWS * RANK)]

    At = at_scr[...]       # (RANK, NODES)        At[b, a]            == A[a, b]
    Rcat = rc_scr[...]     # (RANK, VIEWS*RANK)   Rcat[b, k*RANK + c] == R[b, c, k]

    # A = At^T computed on the MXU (identity * contract-both-minors); no XLU transpose.
    rows = lax.broadcasted_iota(jnp.int32, (NODES, NODES), 0)
    cols = lax.broadcasted_iota(jnp.int32, (NODES, NODES), 1)
    eye = (rows == cols).astype(jnp.float32)
    A = lax.dot_general(eye, At, (((1,), (1,)), ((), ())),
                        preferred_element_type=jnp.float32)           # (NODES, RANK)

    # out[k] = A @ R_k @ A^T   for all views, written straight in (B, V, N, N) layout
    for k in range(VIEWS):
        Rk = Rcat[:, k * RANK:(k + 1) * RANK]                         # (RANK, RANK)
        # G[b, d] = sum_c R_k[b, c] * A[d, c]
        G = jnp.dot(Rk, At, preferred_element_type=jnp.float32)       # (RANK, NODES)
        # out_k[a, d] = sum_b A[a, b] * G[b, d]
        o_ref[0, k] = jnp.dot(A, G, preferred_element_type=jnp.float32)


# ---------------------------------------------------------------------------
# Trace-time parameter folding (BN fold, head-1 concat, head-2 column permute)
# ---------------------------------------------------------------------------
def fold_params(params):
    (w1, b1, w2, b2, g2, be2, m2, v2, w3, b3, g3, be3, m3, v3,
     wa1, ba1, wa2, ba2, wr1, br1, wr2, br2) = params

    s2 = g2 / jnp.sqrt(v2 + EPS)
    w2f = w2 * s2
    b2f = (b2 - m2) * s2 + be2
    s3 = g3 / jnp.sqrt(v3 + EPS)
    w3f = w3 * s3
    b3f = (b3 - m3) * s3 + be3

    wh1 = jnp.concatenate([wa1, wr1], axis=1)          # (4*LAYER, 4*LAYER)
    bh1 = jnp.concatenate([ba1, br1], axis=1)          # (1, 4*LAYER)

    # A head: flat order (node, rank) -> (rank, node)
    wa2p = wa2.reshape(2 * LAYER, NODES, RANK).transpose(0, 2, 1).reshape(2 * LAYER, RANK * NODES)
    ba2p = ba2.reshape(1, NODES, RANK).transpose(0, 2, 1).reshape(1, RANK * NODES)
    # R head: flat order (b, c, k) -> (b, k, c)
    wr2p = wr2.reshape(2 * LAYER, RANK, RANK, VIEWS).transpose(0, 1, 3, 2).reshape(2 * LAYER, RANK * VIEWS * RANK)
    br2p = br2.reshape(1, RANK, RANK, VIEWS).transpose(0, 1, 3, 2).reshape(1, RANK * VIEWS * RANK)

    return (w1, b1, w2f, b2f, w3f, b3f, wh1, bh1, wa2p, ba2p, wr2p, br2p)


# ---------------------------------------------------------------------------
# Full forward: one pallas_call, grid over batch ("parallel" -> 2 TCs on v7x)
# ---------------------------------------------------------------------------
def rescal_forward(noise, params):
    folded = fold_params(params)
    # Every input gets a full-array block with a constant index_map, so weights
    # stay resident in VMEM across grid steps (no re-DMA).
    in_specs = [pl.BlockSpec(a.shape, lambda f: (0, 0)) for a in (noise,) + folded]

    return pl.pallas_call(
        rescal_fused_kernel,
        out_shape=jax.ShapeDtypeStruct((BATCH, VIEWS, NODES, NODES), DTYPE),
        grid_spec=pltpu.PrefetchScalarGridSpec(
            num_scalar_prefetch=0,
            grid=(BATCH,),
            in_specs=in_specs,
            out_specs=pl.BlockSpec((1, VIEWS, NODES, NODES), lambda f: (f, 0, 0, 0)),
            scratch_shapes=[
                pltpu.VMEM((RANK, NODES), jnp.float32),        # A^T tile
                pltpu.VMEM((RANK, VIEWS * RANK), jnp.float32), # [R_0 | R_1 | R_2 | R_3]
            ],
        ),
        compiler_params=pltpu.CompilerParams(
            dimension_semantics=("parallel",)),
    )(noise, *folded)


# ---------------------------------------------------------------------------
# Deterministic parameter init (PyTorch-like uniform(-1/sqrt(fan_in), ...))
# ---------------------------------------------------------------------------
def init_linear(key, fan_in, fan_out):
    kw, kb = jax.random.split(key)
    bound = 1.0 / np.sqrt(fan_in)
    w = jax.random.uniform(kw, (fan_in, fan_out), DTYPE, -bound, bound)
    b = jax.random.uniform(kb, (1, fan_out), DTYPE, -bound, bound)
    return w, b


def init_bn(dim):
    gamma = jnp.ones((1, dim), DTYPE)
    beta = jnp.zeros((1, dim), DTYPE)
    rmean = jnp.zeros((1, dim), DTYPE)
    rvar = jnp.ones((1, dim), DTYPE)
    return gamma, beta, rmean, rvar


def make_params(key):
    ks = jax.random.split(key, 7)
    w1, b1 = init_linear(ks[0], LATENT, LAYER)
    w2, b2 = init_linear(ks[1], LAYER, LAYER * 2)
    g2, be2, m2, v2 = init_bn(LAYER * 2)
    w3, b3 = init_linear(ks[2], LAYER * 2, LAYER * 4)
    g3, be3, m3, v3 = init_bn(LAYER * 4)
    wa1, ba1 = init_linear(ks[3], LAYER * 4, LAYER * 2)
    wa2, ba2 = init_linear(ks[4], LAYER * 2, NODES * RANK)
    wr1, br1 = init_linear(ks[5], LAYER * 4, LAYER * 2)
    wr2, br2 = init_linear(ks[6], LAYER * 2, RANK * RANK * VIEWS)
    return (w1, b1,
            w2, b2, g2, be2, m2, v2,
            w3, b3, g3, be3, m3, v3,
            wa1, ba1, wa2, ba2,
            wr1, br1, wr2, br2)


# ---------------------------------------------------------------------------
# Pure-JAX reference (mirrors the PyTorch module, eval-mode BN)
# ---------------------------------------------------------------------------
def reference_forward(noise, params):
    (w1, b1, w2, b2, g2, be2, m2, v2, w3, b3, g3, be3, m3, v3,
     wa1, ba1, wa2, ba2, wr1, br1, wr2, br2) = params
    h = jax.nn.relu(noise @ w1 + b1)
    h = h @ w2 + b2
    h = (h - m2) / jnp.sqrt(v2 + EPS) * g2 + be2
    h = jax.nn.relu(h)
    h = h @ w3 + b3
    h = (h - m3) / jnp.sqrt(v3 + EPS) * g3 + be3
    s = jax.nn.relu(h)
    a = jax.nn.sigmoid(jax.nn.relu(s @ wa1 + ba1) @ wa2 + ba2)
    r = jax.nn.sigmoid(jax.nn.relu(s @ wr1 + br1) @ wr2 + br2)
    A = a.reshape(BATCH, NODES, RANK)
    R = r.reshape(BATCH, RANK, RANK, VIEWS)
    A_t = jnp.swapaxes(A, 1, 2)
    out = jnp.einsum('fab,fbck,fcd->fadk', A, R, A_t)
    return jnp.transpose(out, (0, 3, 1, 2))


if __name__ == "__main__":
    key = jax.random.PRNGKey(0)
    kp, kn = jax.random.split(key)
    params = make_params(kp)
    noise = jax.random.normal(kn, (BATCH, LATENT), DTYPE)

    out = jax.block_until_ready(rescal_forward(noise, params))
    assert out.shape == (BATCH, VIEWS, NODES, NODES)

    ref = reference_forward(noise, params)
    np.testing.assert_allclose(np.asarray(out), np.asarray(ref), rtol=1e-4, atol=1e-5)

    print("KERNEL_OK")
</pallas_src>

<mosaic_0001>
module attributes {stable_mosaic.version = 11 : i64} {
  func.func @rescal_fused_kernel(%arg0: i32, %arg1: memref<2x32xf32, #tpu.memory_space<vmem>>, %arg2: memref<32x32xf32, #tpu.memory_space<vmem>>, %arg3: memref<1x32xf32, #tpu.memory_space<vmem>>, %arg4: memref<32x64xf32, #tpu.memory_space<vmem>>, %arg5: memref<1x64xf32, #tpu.memory_space<vmem>>, %arg6: memref<64x128xf32, #tpu.memory_space<vmem>>, %arg7: memref<1x128xf32, #tpu.memory_space<vmem>>, %arg8: memref<128x128xf32, #tpu.memory_space<vmem>>, %arg9: memref<1x128xf32, #tpu.memory_space<vmem>>, %arg10: memref<64x1024xf32, #tpu.memory_space<vmem>>, %arg11: memref<1x1024xf32, #tpu.memory_space<vmem>>, %arg12: memref<64x1024xf32, #tpu.memory_space<vmem>>, %arg13: memref<1x1024xf32, #tpu.memory_space<vmem>>, %arg14: memref<1x4x64x64xf32, #tpu.memory_space<vmem>>, %arg15: memref<16x64xf32, #tpu.memory_space<vmem>>, %arg16: memref<16x64xf32, #tpu.memory_space<vmem>>) attributes {dimension_semantics = [#tpu.dimension_semantics<parallel>], iteration_bounds = array<i64: 2>, scalar_prefetch = 0 : i64, scratch_operands = 2 : i64, tpu.core_type = #tpu.core_type<tc>, window_params = [{pipeline_mode = #tpu.pipeline_mode<synchronous>, transform_indices = @transform_0, window_bounds = array<i64: 2, 32>}, {pipeline_mode = #tpu.pipeline_mode<synchronous>, transform_indices = @transform_1, window_bounds = array<i64: 32, 32>}, {pipeline_mode = #tpu.pipeline_mode<synchronous>, transform_indices = @transform_2, window_bounds = array<i64: 1, 32>}, {pipeline_mode = #tpu.pipeline_mode<synchronous>, transform_indices = @transform_3, window_bounds = array<i64: 32, 64>}, {pipeline_mode = #tpu.pipeline_mode<synchronous>, transform_indices = @transform_4, window_bounds = array<i64: 1, 64>}, {pipeline_mode = #tpu.pipeline_mode<synchronous>, transform_indices = @transform_5, window_bounds = array<i64: 64, 128>}, {pipeline_mode = #tpu.pipeline_mode<synchronous>, transform_indices = @transform_6, window_bounds = array<i64: 1, 128>}, {pipeline_mode = #tpu.pipeline_mode<synchronous>, transform_indices = @transform_7, window_bounds = array<i64: 128, 128>}, {pipeline_mode = #tpu.pipeline_mode<synchronous>, transform_indices = @transform_8, window_bounds = array<i64: 1, 128>}, {pipeline_mode = #tpu.pipeline_mode<synchronous>, transform_indices = @transform_9, window_bounds = array<i64: 64, 1024>}, {pipeline_mode = #tpu.pipeline_mode<synchronous>, transform_indices = @transform_10, window_bounds = array<i64: 1, 1024>}, {pipeline_mode = #tpu.pipeline_mode<synchronous>, transform_indices = @transform_11, window_bounds = array<i64: 64, 1024>}, {pipeline_mode = #tpu.pipeline_mode<synchronous>, transform_indices = @transform_12, window_bounds = array<i64: 1, 1024>}, {transform_indices = @transform_13, window_bounds = array<i64: 1, 4, 64, 64>}]} {
    %0 = arith.index_cast %arg0 : i32 to index
    %c0 = arith.constant 0 : index
    %1 = vector.load %arg1[%0, %c0] : memref<2x32xf32, #tpu.memory_space<vmem>>, vector<1x32xf32>
    %c0_0 = arith.constant 0 : index
    %c0_1 = arith.constant 0 : index
    %2 = vector.load %arg2[%c0_0, %c0_1] : memref<32x32xf32, #tpu.memory_space<vmem>>, vector<32x32xf32>
    %cst = arith.constant dense<0.000000e+00> : vector<1x32xf32>
    %3 = tpu.matmul %1, %2, %cst {dimension_numbers = #tpu.dot_dimension_numbers<[1], [0], [0], [1], [0, 0, 1, 1], [], []>} : vector<1x32xf32>, vector<32x32xf32>, vector<1x32xf32> -> vector<1x32xf32>
    %c0_2 = arith.constant 0 : index
    %c0_3 = arith.constant 0 : index
    %4 = vector.load %arg3[%c0_2, %c0_3] : memref<1x32xf32, #tpu.memory_space<vmem>>, vector<1x32xf32>
    %5 = arith.addf %3, %4 : vector<1x32xf32>
    %cst_4 = arith.constant 0.000000e+00 : f32
    %6 = vector.broadcast %cst_4 : f32 to vector<1x32xf32>
    %7 = arith.maximumf %5, %6 : vector<1x32xf32>
    %c0_5 = arith.constant 0 : index
    %c0_6 = arith.constant 0 : index
    %8 = vector.load %arg4[%c0_5, %c0_6] : memref<32x64xf32, #tpu.memory_space<vmem>>, vector<32x64xf32>
    %cst_7 = arith.constant dense<0.000000e+00> : vector<1x64xf32>
    %9 = tpu.matmul %7, %8, %cst_7 {dimension_numbers = #tpu.dot_dimension_numbers<[1], [0], [0], [1], [0, 0, 1, 1], [], []>} : vector<1x32xf32>, vector<32x64xf32>, vector<1x64xf32> -> vector<1x64xf32>
    %c0_8 = arith.constant 0 : index
    %c0_9 = arith.constant 0 : index
    %10 = vector.load %arg5[%c0_8, %c0_9] : memref<1x64xf32, #tpu.memory_space<vmem>>, vector<1x64xf32>
    %11 = arith.addf %9, %10 : vector<1x64xf32>
    %cst_10 = arith.constant 0.000000e+00 : f32
    %12 = vector.broadcast %cst_10 : f32 to vector<1x64xf32>
    %13 = arith.maximumf %11, %12 : vector<1x64xf32>
    %c0_11 = arith.constant 0 : index
    %c0_12 = arith.constant 0 : index
    %14 = vector.load %arg6[%c0_11, %c0_12] : memref<64x128xf32, #tpu.memory_space<vmem>>, vector<64x128xf32>
    %cst_13 = arith.constant dense<0.000000e+00> : vector<1x128xf32>
    %15 = tpu.matmul %13, %14, %cst_13 {dimension_numbers = #tpu.dot_dimension_numbers<[1], [0], [0], [1], [0, 0, 1, 1], [], []>} : vector<1x64xf32>, vector<64x128xf32>, vector<1x128xf32> -> vector<1x128xf32>
    %c0_14 = arith.constant 0 : index
    %c0_15 = arith.constant 0 : index
    %16 = vector.load %arg7[%c0_14, %c0_15] : memref<1x128xf32, #tpu.memory_space<vmem>>, vector<1x128xf32>
    %17 = arith.addf %15, %16 : vector<1x128xf32>
    %cst_16 = arith.constant 0.000000e+00 : f32
    %18 = vector.broadcast %cst_16 : f32 to vector<1x128xf32>
    %19 = arith.maximumf %17, %18 : vector<1x128xf32>
    %c0_17 = arith.constant 0 : index
    %c0_18 = arith.constant 0 : index
    %20 = vector.load %arg8[%c0_17, %c0_18] : memref<128x128xf32, #tpu.memory_space<vmem>>, vector<128x128xf32>
    %cst_19 = arith.constant dense<0.000000e+00> : vector<1x128xf32>
    %21 = tpu.matmul %19, %20, %cst_19 {dimension_numbers = #tpu.dot_dimension_numbers<[1], [0], [0], [1], [0, 0, 1, 1], [], []>} : vector<1x128xf32>, vector<128x128xf32>, vector<1x128xf32> -> vector<1x128xf32>
    %c0_20 = arith.constant 0 : index
    %c0_21 = arith.constant 0 : index
    %22 = vector.load %arg9[%c0_20, %c0_21] : memref<1x128xf32, #tpu.memory_space<vmem>>, vector<1x128xf32>
    %23 = arith.addf %21, %22 : vector<1x128xf32>
    %cst_22 = arith.constant 0.000000e+00 : f32
    %24 = vector.broadcast %cst_22 : f32 to vector<1x128xf32>
    %25 = arith.maximumf %23, %24 : vector<1x128xf32>
    %26 = vector.extract_strided_slice %25 {offsets = [0, 0], sizes = [1, 64], strides = [1, 1]} : vector<1x128xf32> to vector<1x64xf32>
    %27 = vector.extract_strided_slice %25 {offsets = [0, 64], sizes = [1, 64], strides = [1, 1]} : vector<1x128xf32> to vector<1x64xf32>
    %c0_23 = arith.constant 0 : index
    %c0_24 = arith.constant 0 : index
    %28 = vector.load %arg10[%c0_23, %c0_24] : memref<64x1024xf32, #tpu.memory_space<vmem>>, vector<64x1024xf32>
    %cst_25 = arith.constant dense<0.000000e+00> : vector<1x1024xf32>
    %29 = tpu.matmul %26, %28, %cst_25 {dimension_numbers = #tpu.dot_dimension_numbers<[1], [0], [0], [1], [0, 0, 1, 1], [], []>} : vector<1x64xf32>, vector<64x1024xf32>, vector<1x1024xf32> -> vector<1x1024xf32>
    %c0_26 = arith.constant 0 : index
    %c0_27 = arith.constant 0 : index
    %30 = vector.load %arg11[%c0_26, %c0_27] : memref<1x1024xf32, #tpu.memory_space<vmem>>, vector<1x1024xf32>
    %31 = arith.addf %29, %30 : vector<1x1024xf32>
    %32 = arith.negf %31 : vector<1x1024xf32>
    %33 = math.exp %32 : vector<1x1024xf32>
    %cst_28 = arith.constant 1.000000e+00 : f32
    %34 = vector.broadcast %cst_28 : f32 to vector<1x1024xf32>
    %35 = arith.addf %34, %33 : vector<1x1024xf32>
    %36 = arith.divf %34, %35 : vector<1x1024xf32>
    %c0_29 = arith.constant 0 : index
    %c0_30 = arith.constant 0 : index
    %37 = vector.load %arg12[%c0_29, %c0_30] : memref<64x1024xf32, #tpu.memory_space<vmem>>, vector<64x1024xf32>
    %cst_31 = arith.constant dense<0.000000e+00> : vector<1x1024xf32>
    %38 = tpu.matmul %27, %37, %cst_31 {dimension_numbers = #tpu.dot_dimension_numbers<[1], [0], [0], [1], [0, 0, 1, 1], [], []>} : vector<1x64xf32>, vector<64x1024xf32>, vector<1x1024xf32> -> vector<1x1024xf32>
    %c0_32 = arith.constant 0 : index
    %c0_33 = arith.constant 0 : index
    %39 = vector.load %arg13[%c0_32, %c0_33] : memref<1x1024xf32, #tpu.memory_space<vmem>>, vector<1x1024xf32>
    %40 = arith.addf %38, %39 : vector<1x1024xf32>
    %41 = arith.negf %40 : vector<1x1024xf32>
    %42 = math.exp %41 : vector<1x1024xf32>
    %cst_34 = arith.constant 1.000000e+00 : f32
    %43 = vector.broadcast %cst_34 : f32 to vector<1x1024xf32>
    %44 = arith.addf %43, %42 : vector<1x1024xf32>
    %45 = arith.divf %43, %44 : vector<1x1024xf32>
    %46 = vector.extract_strided_slice %36 {offsets = [0, 0], sizes = [1, 64], strides = [1, 1]} : vector<1x1024xf32> to vector<1x64xf32>
    %c0_35 = arith.constant 0 : index
    %c0_36 = arith.constant 0 : index
    %47 = vector.load %arg15[%c0_35, %c0_36] : memref<16x64xf32, #tpu.memory_space<vmem>>, vector<1x64xf32>
    tpu.vector_store %arg15[%c0_35, %c0_36], %46 {strides = array<i32>} : memref<16x64xf32, #tpu.memory_space<vmem>>, vector<1x64xf32>,
    %48 = vector.extract_strided_slice %45 {offsets = [0, 0], sizes = [1, 64], strides = [1, 1]} : vector<1x1024xf32> to vector<1x64xf32>
    %c0_37 = arith.constant 0 : index
    %c0_38 = arith.constant 0 : index
    %49 = vector.load %arg16[%c0_37, %c0_38] : memref<16x64xf32, #tpu.memory_space<vmem>>, vector<1x64xf32>
    tpu.vector_store %arg16[%c0_37, %c0_38], %48 {strides = array<i32>} : memref<16x64xf32, #tpu.memory_space<vmem>>, vector<1x64xf32>,
    %50 = vector.extract_strided_slice %36 {offsets = [0, 64], sizes = [1, 64], strides = [1, 1]} : vector<1x1024xf32> to vector<1x64xf32>
    %c1 = arith.constant 1 : index
    %c0_39 = arith.constant 0 : index
    %51 = vector.load %arg15[%c1, %c0_39] : memref<16x64xf32, #tpu.memory_space<vmem>>, vector<1x64xf32>
    tpu.vector_store %arg15[%c1, %c0_39], %50 {strides = array<i32>} : memref<16x64xf32, #tpu.memory_space<vmem>>, vector<1x64xf32>,
    %52 = vector.extract_strided_slice %45 {offsets = [0, 64], sizes = [1, 64], strides = [1, 1]} : vector<1x1024xf32> to vector<1x64xf32>
    %c1_40 = arith.constant 1 : index
    %c0_41 = arith.constant 0 : index
    %53 = vector.load %arg16[%c1_40, %c0_41] : memref<16x64xf32, #tpu.memory_space<vmem>>, vector<1x64xf32>
    tpu.vector_store %arg16[%c1_40, %c0_41], %52 {strides = array<i32>} : memref<16x64xf32, #tpu.memory_space<vmem>>, vector<1x64xf32>,
    %54 = vector.extract_strided_slice %36 {offsets = [0, 128], sizes = [1, 64], strides = [1, 1]} : vector<1x1024xf32> to vector<1x64xf32>
    %c2 = arith.constant 2 : index
    %c0_42 = arith.constant 0 : index
    %55 = vector.load %arg15[%c2, %c0_42] : memref<16x64xf32, #tpu.memory_space<vmem>>, vector<1x64xf32>
    tpu.vector_store %arg15[%c2, %c0_42], %54 {strides = array<i32>} : memref<16x64xf32, #tpu.memory_space<vmem>>, vector<1x64xf32>,
    %56 = vector.extract_strided_slice %45 {offsets = [0, 128], sizes = [1, 64], strides = [1, 1]} : vector<1x1024xf32> to vector<1x64xf32>
    %c2_43 = arith.constant 2 : index
    %c0_44 = arith.constant 0 : index
    %57 = vector.load %arg16[%c2_43, %c0_44] : memref<16x64xf32, #tpu.memory_space<vmem>>, vector<1x64xf32>
    tpu.vector_store %arg16[%c2_43, %c0_44], %56 {strides = array<i32>} : memref<16x64xf32, #tpu.memory_space<vmem>>, vector<1x64xf32>,
    %58 = vector.extract_strided_slice %36 {offsets = [0, 192], sizes = [1, 64], strides = [1, 1]} : vector<1x1024xf32> to vector<1x64xf32>
    %c3 = arith.constant 3 : index
    %c0_45 = arith.constant 0 : index
    %59 = vector.load %arg15[%c3, %c0_45] : memref<16x64xf32, #tpu.memory_space<vmem>>, vector<1x64xf32>
    tpu.vector_store %arg15[%c3, %c0_45], %58 {strides = array<i32>} : memref<16x64xf32, #tpu.memory_space<vmem>>, vector<1x64xf32>,
    %60 = vector.extract_strided_slice %45 {offsets = [0, 192], sizes = [1, 64], strides = [1, 1]} : vector<1x1024xf32> to vector<1x64xf32>
    %c3_46 = arith.constant 3 : index
    %c0_47 = arith.constant 0 : index
    %61 = vector.load %arg16[%c3_46, %c0_47] : memref<16x64xf32, #tpu.memory_space<vmem>>, vector<1x64xf32>
    tpu.vector_store %arg16[%c3_46, %c0_47], %60 {strides = array<i32>} : memref<16x64xf32, #tpu.memory_space<vmem>>, vector<1x64xf32>,
    %62 = vector.extract_strided_slice %36 {offsets = [0, 256], sizes = [1, 64], strides = [1, 1]} : vector<1x1024xf32> to vector<1x64xf32>
    %c4 = arith.constant 4 : index
    %c0_48 = arith.constant 0 : index
    %63 = vector.load %arg15[%c4, %c0_48] : memref<16x64xf32, #tpu.memory_space<vmem>>, vector<1x64xf32>
    tpu.vector_store %arg15[%c4, %c0_48], %62 {strides = array<i32>} : memref<16x64xf32, #tpu.memory_space<vmem>>, vector<1x64xf32>,
    %64 = vector.extract_strided_slice %45 {offsets = [0, 256], sizes = [1, 64], strides = [1, 1]} : vector<1x1024xf32> to vector<1x64xf32>
    %c4_49 = arith.constant 4 : index
    %c0_50 = arith.constant 0 : index
    %65 = vector.load %arg16[%c4_49, %c0_50] : memref<16x64xf32, #tpu.memory_space<vmem>>, vector<1x64xf32>
    tpu.vector_store %arg16[%c4_49, %c0_50], %64 {strides = array<i32>} : memref<16x64xf32, #tpu.memory_space<vmem>>, vector<1x64xf32>,
    %66 = vector.extract_strided_slice %36 {offsets = [0, 320], sizes = [1, 64], strides = [1, 1]} : vector<1x1024xf32> to vector<1x64xf32>
    %c5 = arith.constant 5 : index
    %c0_51 = arith.constant 0 : index
    %67 = vector.load %arg15[%c5, %c0_51] : memref<16x64xf32, #tpu.memory_space<vmem>>, vector<1x64xf32>
    tpu.vector_store %arg15[%c5, %c0_51], %66 {strides = array<i32>} : memref<16x64xf32, #tpu.memory_space<vmem>>, vector<1x64xf32>,
    %68 = vector.extract_strided_slice %45 {offsets = [0, 320], sizes = [1, 64], strides = [1, 1]} : vector<1x1024xf32> to vector<1x64xf32>
    %c5_52 = arith.constant 5 : index
    %c0_53 = arith.constant 0 : index
    %69 = vector.load %arg16[%c5_52, %c0_53] : memref<16x64xf32, #tpu.memory_space<vmem>>, vector<1x64xf32>
    tpu.vector_store %arg16[%c5_52, %c0_53], %68 {strides = array<i32>} : memref<16x64xf32, #tpu.memory_space<vmem>>, vector<1x64xf32>,
    %70 = vector.extract_strided_slice %36 {offsets = [0, 384], sizes = [1, 64], strides = [1, 1]} : vector<1x1024xf32> to vector<1x64xf32>
    %c6 = arith.constant 6 : index
    %c0_54 = arith.constant 0 : index
    %71 = vector.load %arg15[%c6, %c0_54] : memref<16x64xf32, #tpu.memory_space<vmem>>, vector<1x64xf32>
    tpu.vector_store %arg15[%c6, %c0_54], %70 {strides = array<i32>} : memref<16x64xf32, #tpu.memory_space<vmem>>, vector<1x64xf32>,
    %72 = vector.extract_strided_slice %45 {offsets = [0, 384], sizes = [1, 64], strides = [1, 1]} : vector<1x1024xf32> to vector<1x64xf32>
    %c6_55 = arith.constant 6 : index
    %c0_56 = arith.constant 0 : index
    %73 = vector.load %arg16[%c6_55, %c0_56] : memref<16x64xf32, #tpu.memory_space<vmem>>, vector<1x64xf32>
    tpu.vector_store %arg16[%c6_55, %c0_56], %72 {strides = array<i32>} : memref<16x64xf32, #tpu.memory_space<vmem>>, vector<1x64xf32>,
    %74 = vector.extract_strided_slice %36 {offsets = [0, 448], sizes = [1, 64], strides = [1, 1]} : vector<1x1024xf32> to vector<1x64xf32>
    %c7 = arith.constant 7 : index
    %c0_57 = arith.constant 0 : index
    %75 = vector.load %arg15[%c7, %c0_57] : memref<16x64xf32, #tpu.memory_space<vmem>>, vector<1x64xf32>
    tpu.vector_store %arg15[%c7, %c0_57], %74 {strides = array<i32>} : memref<16x64xf32, #tpu.memory_space<vmem>>, vector<1x64xf32>,
    %76 = vector.extract_strided_slice %45 {offsets = [0, 448], sizes = [1, 64], strides = [1, 1]} : vector<1x1024xf32> to vector<1x64xf32>
    %c7_58 = arith.constant 7 : index
    %c0_59 = arith.constant 0 : index
    %77 = vector.load %arg16[%c7_58, %c0_59] : memref<16x64xf32, #tpu.memory_space<vmem>>, vector<1x64xf32>
    tpu.vector_store %arg16[%c7_58, %c0_59], %76 {strides = array<i32>} : memref<16x64xf32, #tpu.memory_space<vmem>>, vector<1x64xf32>,
    %78 = vector.extract_strided_slice %36 {offsets = [0, 512], sizes = [1, 64], strides = [1, 1]} : vector<1x1024xf32> to vector<1x64xf32>
    %c8 = arith.constant 8 : index
    %c0_60 = arith.constant 0 : index
    %79 = vector.load %arg15[%c8, %c0_60] : memref<16x64xf32, #tpu.memory_space<vmem>>, vector<1x64xf32>
    tpu.vector_store %arg15[%c8, %c0_60], %78 {strides = array<i32>} : memref<16x64xf32, #tpu.memory_space<vmem>>, vector<1x64xf32>,
    %80 = vector.extract_strided_slice %45 {offsets = [0, 512], sizes = [1, 64], strides = [1, 1]} : vector<1x1024xf32> to vector<1x64xf32>
    %c8_61 = arith.constant 8 : index
    %c0_62 = arith.constant 0 : index
    %81 = vector.load %arg16[%c8_61, %c0_62] : memref<16x64xf32, #tpu.memory_space<vmem>>, vector<1x64xf32>
    tpu.vector_store %arg16[%c8_61, %c0_62], %80 {strides = array<i32>} : memref<16x64xf32, #tpu.memory_space<vmem>>, vector<1x64xf32>,
    %82 = vector.extract_strided_slice %36 {offsets = [0, 576], sizes = [1, 64], strides = [1, 1]} : vector<1x1024xf32> to vector<1x64xf32>
    %c9 = arith.constant 9 : index
    %c0_63 = arith.constant 0 : index
    %83 = vector.load %arg15[%c9, %c0_63] : memref<16x64xf32, #tpu.memory_space<vmem>>, vector<1x64xf32>
    tpu.vector_store %arg15[%c9, %c0_63], %82 {strides = array<i32>} : memref<16x64xf32, #tpu.memory_space<vmem>>, vector<1x64xf32>,
    %84 = vector.extract_strided_slice %45 {offsets = [0, 576], sizes = [1, 64], strides = [1, 1]} : vector<1x1024xf32> to vector<1x64xf32>
    %c9_64 = arith.constant 9 : index
    %c0_65 = arith.constant 0 : index
    %85 = vector.load %arg16[%c9_64, %c0_65] : memref<16x64xf32, #tpu.memory_space<vmem>>, vector<1x64xf32>
    tpu.vector_store %arg16[%c9_64, %c0_65], %84 {strides = array<i32>} : memref<16x64xf32, #tpu.memory_space<vmem>>, vector<1x64xf32>,
    %86 = vector.extract_strided_slice %36 {offsets = [0, 640], sizes = [1, 64], strides = [1, 1]} : vector<1x1024xf32> to vector<1x64xf32>
    %c10 = arith.constant 10 : index
    %c0_66 = arith.constant 0 : index
    %87 = vector.load %arg15[%c10, %c0_66] : memref<16x64xf32, #tpu.memory_space<vmem>>, vector<1x64xf32>
    tpu.vector_store %arg15[%c10, %c0_66], %86 {strides = array<i32>} : memref<16x64xf32, #tpu.memory_space<vmem>>, vector<1x64xf32>,
    %88 = vector.extract_strided_slice %45 {offsets = [0, 640], sizes = [1, 64], strides = [1, 1]} : vector<1x1024xf32> to vector<1x64xf32>
    %c10_67 = arith.constant 10 : index
    %c0_68 = arith.constant 0 : index
    %89 = vector.load %arg16[%c10_67, %c0_68] : memref<16x64xf32, #tpu.memory_space<vmem>>, vector<1x64xf32>
    tpu.vector_store %arg16[%c10_67, %c0_68], %88 {strides = array<i32>} : memref<16x64xf32, #tpu.memory_space<vmem>>, vector<1x64xf32>,
    %90 = vector.extract_strided_slice %36 {offsets = [0, 704], sizes = [1, 64], strides = [1, 1]} : vector<1x1024xf32> to vector<1x64xf32>
    %c11 = arith.constant 11 : index
    %c0_69 = arith.constant 0 : index
    %91 = vector.load %arg15[%c11, %c0_69] : memref<16x64xf32, #tpu.memory_space<vmem>>, vector<1x64xf32>
    tpu.vector_store %arg15[%c11, %c0_69], %90 {strides = array<i32>} : memref<16x64xf32, #tpu.memory_space<vmem>>, vector<1x64xf32>,
    %92 = vector.extract_strided_slice %45 {offsets = [0, 704], sizes = [1, 64], strides = [1, 1]} : vector<1x1024xf32> to vector<1x64xf32>
    %c11_70 = arith.constant 11 : index
    %c0_71 = arith.constant 0 : index
    %93 = vector.load %arg16[%c11_70, %c0_71] : memref<16x64xf32, #tpu.memory_space<vmem>>, vector<1x64xf32>
    tpu.vector_store %arg16[%c11_70, %c0_71], %92 {strides = array<i32>} : memref<16x64xf32, #tpu.memory_space<vmem>>, vector<1x64xf32>,
    %94 = vector.extract_strided_slice %36 {offsets = [0, 768], sizes = [1, 64], strides = [1, 1]} : vector<1x1024xf32> to vector<1x64xf32>
    %c12 = arith.constant 12 : index
    %c0_72 = arith.constant 0 : index
    %95 = vector.load %arg15[%c12, %c0_72] : memref<16x64xf32, #tpu.memory_space<vmem>>, vector<1x64xf32>
    tpu.vector_store %arg15[%c12, %c0_72], %94 {strides = array<i32>} : memref<16x64xf32, #tpu.memory_space<vmem>>, vector<1x64xf32>,
    %96 = vector.extract_strided_slice %45 {offsets = [0, 768], sizes = [1, 64], strides = [1, 1]} : vector<1x1024xf32> to vector<1x64xf32>
    %c12_73 = arith.constant 12 : index
    %c0_74 = arith.constant 0 : index
    %97 = vector.load %arg16[%c12_73, %c0_74] : memref<16x64xf32, #tpu.memory_space<vmem>>, vector<1x64xf32>
    tpu.vector_store %arg16[%c12_73, %c0_74], %96 {strides = array<i32>} : memref<16x64xf32, #tpu.memory_space<vmem>>, vector<1x64xf32>,
    %98 = vector.extract_strided_slice %36 {offsets = [0, 832], sizes = [1, 64], strides = [1, 1]} : vector<1x1024xf32> to vector<1x64xf32>
    %c13 = arith.constant 13 : index
    %c0_75 = arith.constant 0 : index
    %99 = vector.load %arg15[%c13, %c0_75] : memref<16x64xf32, #tpu.memory_space<vmem>>, vector<1x64xf32>
    tpu.vector_store %arg15[%c13, %c0_75], %98 {strides = array<i32>} : memref<16x64xf32, #tpu.memory_space<vmem>>, vector<1x64xf32>,
    %100 = vector.extract_strided_slice %45 {offsets = [0, 832], sizes = [1, 64], strides = [1, 1]} : vector<1x1024xf32> to vector<1x64xf32>
    %c13_76 = arith.constant 13 : index
    %c0_77 = arith.constant 0 : index
    %101 = vector.load %arg16[%c13_76, %c0_77] : memref<16x64xf32, #tpu.memory_space<vmem>>, vector<1x64xf32>
    tpu.vector_store %arg16[%c13_76, %c0_77], %100 {strides = array<i32>} : memref<16x64xf32, #tpu.memory_space<vmem>>, vector<1x64xf32>,
    %102 = vector.extract_strided_slice %36 {offsets = [0, 896], sizes = [1, 64], strides = [1, 1]} : vector<1x1024xf32> to vector<1x64xf32>
    %c14 = arith.constant 14 : index
    %c0_78 = arith.constant 0 : index
    %103 = vector.load %arg15[%c14, %c0_78] : memref<16x64xf32, #tpu.memory_space<vmem>>, vector<1x64xf32>
    tpu.vector_store %arg15[%c14, %c0_78], %102 {strides = array<i32>} : memref<16x64xf32, #tpu.memory_space<vmem>>, vector<1x64xf32>,
    %104 = vector.extract_strided_slice %45 {offsets = [0, 896], sizes = [1, 64], strides = [1, 1]} : vector<1x1024xf32> to vector<1x64xf32>
    %c14_79 = arith.constant 14 : index
    %c0_80 = arith.constant 0 : index
    %105 = vector.load %arg16[%c14_79, %c0_80] : memref<16x64xf32, #tpu.memory_space<vmem>>, vector<1x64xf32>
    tpu.vector_store %arg16[%c14_79, %c0_80], %104 {strides = array<i32>} : memref<16x64xf32, #tpu.memory_space<vmem>>, vector<1x64xf32>,
    %106 = vector.extract_strided_slice %36 {offsets = [0, 960], sizes = [1, 64], strides = [1, 1]} : vector<1x1024xf32> to vector<1x64xf32>
    %c15 = arith.constant 15 : index
    %c0_81 = arith.constant 0 : index
    %107 = vector.load %arg15[%c15, %c0_81] : memref<16x64xf32, #tpu.memory_space<vmem>>, vector<1x64xf32>
    tpu.vector_store %arg15[%c15, %c0_81], %106 {strides = array<i32>} : memref<16x64xf32, #tpu.memory_space<vmem>>, vector<1x64xf32>,
    %108 = vector.extract_strided_slice %45 {offsets = [0, 960], sizes = [1, 64], strides = [1, 1]} : vector<1x1024xf32> to vector<1x64xf32>
    %c15_82 = arith.constant 15 : index
    %c0_83 = arith.constant 0 : index
    %109 = vector.load %arg16[%c15_82, %c0_83] : memref<16x64xf32, #tpu.memory_space<vmem>>, vector<1x64xf32>
    tpu.vector_store %arg16[%c15_82, %c0_83], %108 {strides = array<i32>} : memref<16x64xf32, #tpu.memory_space<vmem>>, vector<1x64xf32>,
    %c0_84 = arith.constant 0 : index
    %c0_85 = arith.constant 0 : index
    %110 = vector.load %arg15[%c0_84, %c0_85] : memref<16x64xf32, #tpu.memory_space<vmem>>, vector<16x64xf32>
    %c0_86 = arith.constant 0 : index
    %c0_87 = arith.constant 0 : index
    %111 = vector.load %arg16[%c0_86, %c0_87] : memref<16x64xf32, #tpu.memory_space<vmem>>, vector<16x64xf32>
    %112 = tpu.iota {dimensions = array<i32: 0>} : vector<64x64xi32>
    %113 = tpu.iota {dimensions = array<i32: 1>} : vector<64x64xi32>
    %114 = arith.cmpi eq, %112, %113 : vector<64x64xi32>
    %115 = arith.extui %114 : vector<64x64xi1> to vector<64x64xi32>
    %116 = arith.sitofp %115 : vector<64x64xi32> to vector<64x64xf32>
    %cst_88 = arith.constant dense<0.000000e+00> : vector<64x16xf32>
    %117 = tpu.matmul %116, %110, %cst_88 {dimension_numbers = #tpu.dot_dimension_numbers<[1], [1], [0], [0], [0, 0, 1, 0], [], []>} : vector<64x64xf32>, vector<16x64xf32>, vector<64x16xf32> -> vector<64x16xf32>
    %118 = vector.extract_strided_slice %111 {offsets = [0, 0], sizes = [16, 16], strides = [1, 1]} : vector<16x64xf32> to vector<16x16xf32>
    %cst_89 = arith.constant dense<0.000000e+00> : vector<16x64xf32>
    %119 = tpu.matmul %118, %110, %cst_89 {dimension_numbers = #tpu.dot_dimension_numbers<[1], [0], [0], [1], [0, 0, 1, 1], [], []>} : vector<16x16xf32>, vector<16x64xf32>, vector<16x64xf32> -> vector<16x64xf32>
    %cst_90 = arith.constant dense<0.000000e+00> : vector<64x64xf32>
    %120 = tpu.matmul %117, %119, %cst_90 {dimension_numbers = #tpu.dot_dimension_numbers<[1], [0], [0], [1], [0, 0, 1, 1], [], []>} : vector<64x16xf32>, vector<16x64xf32>, vector<64x64xf32> -> vector<64x64xf32>
    %c0_91 = arith.constant 0 : index
    %c0_92 = arith.constant 0 : index
    %c0_93 = arith.constant 0 : index
    %c0_94 = arith.constant 0 : index
    %121 = vector.load %arg14[%c0_91, %c0_92, %c0_93, %c0_94] : memref<1x4x64x64xf32, #tpu.memory_space<vmem>>, vector<1x1x64x64xf32>
    %122 = vector.shape_cast %121 : vector<1x1x64x64xf32> to vector<64x64xf32>
    %123 = vector.shape_cast %120 : vector<64x64xf32> to vector<1x1x64x64xf32>
    tpu.vector_store %arg14[%c0_91, %c0_92, %c0_93, %c0_94], %123 {strides = array<i32>} : memref<1x4x64x64xf32, #tpu.memory_space<vmem>>, vector<1x1x64x64xf32>,
    %124 = vector.extract_strided_slice %111 {offsets = [0, 16], sizes = [16, 16], strides = [1, 1]} : vector<16x64xf32> to vector<16x16xf32>
    %cst_95 = arith.constant dense<0.000000e+00> : vector<16x64xf32>
    %125 = tpu.matmul %124, %110, %cst_95 {dimension_numbers = #tpu.dot_dimension_numbers<[1], [0], [0], [1], [0, 0, 1, 1], [], []>} : vector<16x16xf32>, vector<16x64xf32>, vector<16x64xf32> -> vector<16x64xf32>
    %cst_96 = arith.constant dense<0.000000e+00> : vector<64x64xf32>
    %126 = tpu.matmul %117, %125, %cst_96 {dimension_numbers = #tpu.dot_dimension_numbers<[1], [0], [0], [1], [0, 0, 1, 1], [], []>} : vector<64x16xf32>, vector<16x64xf32>, vector<64x64xf32> -> vector<64x64xf32>
    %c0_97 = arith.constant 0 : index
    %c1_98 = arith.constant 1 : index
    %c0_99 = arith.constant 0 : index
    %c0_100 = arith.constant 0 : index
    %127 = vector.load %arg14[%c0_97, %c1_98, %c0_99, %c0_100] : memref<1x4x64x64xf32, #tpu.memory_space<vmem>>, vector<1x1x64x64xf32>
    %128 = vector.shape_cast %127 : vector<1x1x64x64xf32> to vector<64x64xf32>
    %129 = vector.shape_cast %126 : vector<64x64xf32> to vector<1x1x64x64xf32>
    tpu.vector_store %arg14[%c0_97, %c1_98, %c0_99, %c0_100], %129 {strides = array<i32>} : memref<1x4x64x64xf32, #tpu.memory_space<vmem>>, vector<1x1x64x64xf32>,
    %130 = vector.extract_strided_slice %111 {offsets = [0, 32], sizes = [16, 16], strides = [1, 1]} : vector<16x64xf32> to vector<16x16xf32>
    %cst_101 = arith.constant dense<0.000000e+00> : vector<16x64xf32>
    %131 = tpu.matmul %130, %110, %cst_101 {dimension_numbers = #tpu.dot_dimension_numbers<[1], [0], [0], [1], [0, 0, 1, 1], [], []>} : vector<16x16xf32>, vector<16x64xf32>, vector<16x64xf32> -> vector<16x64xf32>
    %cst_102 = arith.constant dense<0.000000e+00> : vector<64x64xf32>
    %132 = tpu.matmul %117, %131, %cst_102 {dimension_numbers = #tpu.dot_dimension_numbers<[1], [0], [0], [1], [0, 0, 1, 1], [], []>} : vector<64x16xf32>, vector<16x64xf32>, vector<64x64xf32> -> vector<64x64xf32>
    %c0_103 = arith.constant 0 : index
    %c2_104 = arith.constant 2 : index
    %c0_105 = arith.constant 0 : index
    %c0_106 = arith.constant 0 : index
    %133 = vector.load %arg14[%c0_103, %c2_104, %c0_105, %c0_106] : memref<1x4x64x64xf32, #tpu.memory_space<vmem>>, vector<1x1x64x64xf32>
    %134 = vector.shape_cast %133 : vector<1x1x64x64xf32> to vector<64x64xf32>
    %135 = vector.shape_cast %132 : vector<64x64xf32> to vector<1x1x64x64xf32>
    tpu.vector_store %arg14[%c0_103, %c2_104, %c0_105, %c0_106], %135 {strides = array<i32>} : memref<1x4x64x64xf32, #tpu.memory_space<vmem>>, vector<1x1x64x64xf32>,
    %136 = vector.extract_strided_slice %111 {offsets = [0, 48], sizes = [16, 16], strides = [1, 1]} : vector<16x64xf32> to vector<16x16xf32>
    %cst_107 = arith.constant dense<0.000000e+00> : vector<16x64xf32>
    %137 = tpu.matmul %136, %110, %cst_107 {dimension_numbers = #tpu.dot_dimension_numbers<[1], [0], [0], [1], [0, 0, 1, 1], [], []>} : vector<16x16xf32>, vector<16x64xf32>, vector<16x64xf32> -> vector<16x64xf32>
    %cst_108 = arith.constant dense<0.000000e+00> : vector<64x64xf32>
    %138 = tpu.matmul %117, %137, %cst_108 {dimension_numbers = #tpu.dot_dimension_numbers<[1], [0], [0], [1], [0, 0, 1, 1], [], []>} : vector<64x16xf32>, vector<16x64xf32>, vector<64x64xf32> -> vector<64x64xf32>
    %c0_109 = arith.constant 0 : index
    %c3_110 = arith.constant 3 : index
    %c0_111 = arith.constant 0 : index
    %c0_112 = arith.constant 0 : index
    %139 = vector.load %arg14[%c0_109, %c3_110, %c0_111, %c0_112] : memref<1x4x64x64xf32, #tpu.memory_space<vmem>>, vector<1x1x64x64xf32>
    %140 = vector.shape_cast %139 : vector<1x1x64x64xf32> to vector<64x64xf32>
    %141 = vector.shape_cast %138 : vector<64x64xf32> to vector<1x1x64x64xf32>
    tpu.vector_store %arg14[%c0_109, %c3_110, %c0_111, %c0_112], %141 {strides = array<i32>} : memref<1x4x64x64xf32, #tpu.memory_space<vmem>>, vector<1x1x64x64xf32>,
    return
  }
  func.func @transform_0(%arg0: i32) -> (i32, i32) {
    %c0_i32 = arith.constant 0 : i32
    %c0_i32_0 = arith.constant 0 : i32
    %c0_i32_1 = arith.constant 0 : i32
    return %c0_i32, %c0_i32_0 : i32, i32
  }
  func.func @transform_1(%arg0: i32) -> (i32, i32) {
    %c0_i32 = arith.constant 0 : i32
    %c0_i32_0 = arith.constant 0 : i32
    %c0_i32_1 = arith.constant 0 : i32
    return %c0_i32, %c0_i32_0 : i32, i32
  }
  func.func @transform_2(%arg0: i32) -> (i32, i32) {
    %c0_i32 = arith.constant 0 : i32
    %c0_i32_0 = arith.constant 0 : i32
    %c0_i32_1 = arith.constant 0 : i32
    return %c0_i32, %c0_i32_0 : i32, i32
  }
  func.func @transform_3(%arg0: i32) -> (i32, i32) {
    %c0_i32 = arith.constant 0 : i32
    %c0_i32_0 = arith.constant 0 : i32
    %c0_i32_1 = arith.constant 0 : i32
    return %c0_i32, %c0_i32_0 : i32, i32
  }
  func.func @transform_4(%arg0: i32) -> (i32, i32) {
    %c0_i32 = arith.constant 0 : i32
    %c0_i32_0 = arith.constant 0 : i32
    %c0_i32_1 = arith.constant 0 : i32
    return %c0_i32, %c0_i32_0 : i32, i32
  }
  func.func @transform_5(%arg0: i32) -> (i32, i32) {
    %c0_i32 = arith.constant 0 : i32
    %c0_i32_0 = arith.constant 0 : i32
    %c0_i32_1 = arith.constant 0 : i32
    return %c0_i32, %c0_i32_0 : i32, i32
  }
  func.func @transform_6(%arg0: i32) -> (i32, i32) {
    %c0_i32 = arith.constant 0 : i32
    %c0_i32_0 = arith.constant 0 : i32
    %c0_i32_1 = arith.constant 0 : i32
    return %c0_i32, %c0_i32_0 : i32, i32
  }
  func.func @transform_7(%arg0: i32) -> (i32, i32) {
    %c0_i32 = arith.constant 0 : i32
    %c0_i32_0 = arith.constant 0 : i32
    %c0_i32_1 = arith.constant 0 : i32
    return %c0_i32, %c0_i32_0 : i32, i32
  }
  func.func @transform_8(%arg0: i32) -> (i32, i32) {
    %c0_i32 = arith.constant 0 : i32
    %c0_i32_0 = arith.constant 0 : i32
    %c0_i32_1 = arith.constant 0 : i32
    return %c0_i32, %c0_i32_0 : i32, i32
  }
  func.func @transform_9(%arg0: i32) -> (i32, i32) {
    %c0_i32 = arith.constant 0 : i32
    %c0_i32_0 = arith.constant 0 : i32
    %c0_i32_1 = arith.constant 0 : i32
    return %c0_i32, %c0_i32_0 : i32, i32
  }
  func.func @transform_10(%arg0: i32) -> (i32, i32) {
    %c0_i32 = arith.constant 0 : i32
    %c0_i32_0 = arith.constant 0 : i32
    %c0_i32_1 = arith.constant 0 : i32
    return %c0_i32, %c0_i32_0 : i32, i32
  }
  func.func @transform_11(%arg0: i32) -> (i32, i32) {
    %c0_i32 = arith.constant 0 : i32
    %c0_i32_0 = arith.constant 0 : i32
    %c0_i32_1 = arith.constant 0 : i32
    return %c0_i32, %c0_i32_0 : i32, i32
  }
  func.func @transform_12(%arg0: i32) -> (i32, i32) {
    %c0_i32 = arith.constant 0 : i32
    %c0_i32_0 = arith.constant 0 : i32
    %c0_i32_1 = arith.constant 0 : i32
    return %c0_i32, %c0_i32_0 : i32, i32
  }
  func.func @transform_13(%arg0: i32) -> (i32, i32, i32, i32) {
    %c0_i32 = arith.constant 0 : i32
    %c0_i32_0 = arith.constant 0 : i32
    %c0_i32_1 = arith.constant 0 : i32
    %c0_i32_2 = arith.constant 0 : i32
    return %arg0, %c0_i32, %c0_i32_0, %c0_i32_1 : i32, i32, i32, i32
  }
}

</mosaic_0001>

<llo_original>
// kernel: tpu_custom_call.1
$region0: #{tpu_custom_call.1}
  #allocation0 [shape = 'u32[]', space=smem, size = 0x4, offset = 0x4, fixed_abs, tag = 'smem constant byte address 0x4 - core index']
  #allocation1 [shape = 'u32[72,128]{1,0:T(1,128)}', space=vmem, size = 0x9000, scoped, tag = 'internal scratch']
  #allocation2 [shape = 'f32[16,64]{1,0:T(8,128)}', space=vmem, size = 0x2000, scoped, tag = 'scratch operand']
  #allocation3 [shape = 'f32[16,64]{1,0:T(8,128)}', space=vmem, size = 0x2000, scoped, tag = 'scratch operand']
  %s0 = inlined_call_operand.hbm [shape: f32[2,32], index: 0, kind: input, shape index: {}]
  %s1 = inlined_call_operand.hbm [shape: f32[32,32], index: 1, kind: input, shape index: {}]
  %s2 = inlined_call_operand.vmem [shape: f32[1,32], index: 2, kind: input, shape index: {}]
  %s3 = inlined_call_operand.hbm [shape: f32[32,64], index: 3, kind: input, shape index: {}]
  %s4 = inlined_call_operand.hbm [shape: f32[1,64], index: 4, kind: input, shape index: {}]
  %s5 = inlined_call_operand.hbm [shape: f32[64,128], index: 5, kind: input, shape index: {}]
  %s6 = inlined_call_operand.hbm [shape: f32[1,128], index: 6, kind: input, shape index: {}]
  %s7 = inlined_call_operand.hbm [shape: f32[128,128], index: 7, kind: input, shape index: {}]
  %s8 = inlined_call_operand.hbm [shape: f32[1,128], index: 8, kind: input, shape index: {}]
  %s9 = inlined_call_operand.hbm [shape: f32[64,1024], index: 9, kind: input, shape index: {}]
  %s10 = inlined_call_operand.vmem [shape: f32[1,1024], index: 10, kind: input, shape index: {}]
  %s11 = inlined_call_operand.hbm [shape: f32[64,1024], index: 11, kind: input, shape index: {}]
  %s12 = inlined_call_operand.hbm [shape: f32[1,1024], index: 12, kind: input, shape index: {}]
  %s13 = inlined_call_operand.hbm [shape: f32[2,4,64,64], index: 13, kind: output, shape index: {}]
  %s14 = sld [smem:[#allocation0]]
  $region129: #{tpu_custom_call.1} parent=0
    _
  %s16 = ssub.s32 1, %s14
  %s17 = scalar_select 0, %s16, %s14
  $region1: #{tpu_custom_call.1} parent=0
    #allocation4 [shape = 'u8[1024]{0}', space=vmem, size = 0x400, scoped, tag = 'input window, operand 0, single buffered']
    #allocation5 [shape = 's32[2]{0}', space=sflag, size = 0x8, scoped, tag = 'scoped memory for tpu_custom_call.1']
    #allocation6 [shape = 's32[2]{0}', space=sflag, size = 0x8, scoped, tag = 'scoped memory for tpu_custom_call.1']
    #allocation7 [shape = 'u8[16384]{0}', space=vmem, size = 0x4000, scoped, tag = 'input window, operand 1, single buffered']
    #allocation8 [shape = 's32[1]{0}', space=sflag, size = 0x4, scoped, tag = 'scoped memory for tpu_custom_call.1']
    #allocation9 [shape = 'u8[16384]{0}', space=vmem, size = 0x4000, scoped, tag = 'input window, operand 3, single buffered']
    #allocation10 [shape = 'u8[512]{0}', space=vmem, size = 0x400, scoped, tag = 'input window, operand 4, single buffered']
    #allocation11 [shape = 's32[1]{0}', space=sflag, size = 0x4, scoped, tag = 'scoped memory for tpu_custom_call.1']
    #allocation12 [shape = 'u8[32768]{0}', space=vmem, size = 0x8000, scoped, tag = 'input window, operand 5, single buffered']
    #allocation13 [shape = 'u8[512]{0}', space=vmem, size = 0x400, scoped, tag = 'input window, operand 6, single buffered']
    #allocation14 [shape = 's32[1]{0}', space=sflag, size = 0x4, scoped, tag = 'scoped memory for tpu_custom_call.1']
    #allocation15 [shape = 'u8[65536]{0}', space=vmem, size = 0x10000, scoped, tag = 'input window, operand 7, single buffered']
    #allocation16 [shape = 'u8[512]{0}', space=vmem, size = 0x400, scoped, tag = 'input window, operand 8, single buffered']
    #allocation17 [shape = 's32[1]{0}', space=sflag, size = 0x4, scoped, tag = 'scoped memory for tpu_custom_call.1']
    #allocation18 [shape = 'u8[262144]{0}', space=vmem, size = 0x40000, scoped, tag = 'input window, operand 9, single buffered']
    #allocation19 [shape = 'u8[262144]{0}', space=vmem, size = 0x40000, scoped, tag = 'input window, operand 11, single buffered']
    #allocation20 [shape = 's32[1]{0}', space=sflag, size = 0x4, scoped, tag = 'scoped memory for tpu_custom_call.1']
    #allocation21 [shape = 'u8[4096]{0}', space=vmem, size = 0x1000, scoped, tag = 'input window, operand 12, single buffered']
    #allocation22 [shape = 'u8[262144]{0}', space=vmem, size = 0x40000, scoped, tag = 'output window, operand 0']
    %18 = vsyncpa [#allocation5], 0
    %19 = vsyncpa [#allocation8], 0
    %20 = vsyncpa [#allocation11], 0
    %21 = vsyncpa [#allocation14], 0
    %22 = vsyncpa [#allocation17], 0
    %23 = vsyncpa [#allocation20], 0
    %24 = vsyncpa [#allocation6], 0
    %s25 = scalar_lea.sflag [#allocation6], 1
    %26 = vsyncpa %s25, 0
    loop: start=0, step=1, limit=4
    $region2: #{tpu_custom_call.1} parent=1 // loop_pre_header
      _
    $region3: #{tpu_custom_call.1} parent=1 // loop_header
      %s28 = sphi 0, %s32
      %p29 = scmp.ge.s32.totalorder %s28, 4
      %s36 = sphi 0, %s36
      %s38 = sphi 0, %s36
      %s39 = sphi 0, %s38
      %s53 = sphi 0, %s39
      %s57 = sphi 0, %s57
      %s59 = sphi 0, %s57
      %s60 = sphi 0, %s59
      %s74 = sphi 0, %s60
      %s78 = sphi 0, %s78
      %s80 = sphi 0, %s78
      %s81 = sphi 0, %s80
      %s95 = sphi 0, %s81
      %s99 = sphi 0, %s99
      %s101 = sphi 0, %s99
      %s102 = sphi 0, %s101
      %s116 = sphi 0, %s102
      %s120 = sphi 0, %s120
      %s122 = sphi 0, %s120
      %s123 = sphi 0, %s122
      %s137 = sphi 0, %s123
      %s141 = sphi 0, %s141
      %s143 = sphi 0, %s141
      %s144 = sphi 0, %s143
      %s158 = sphi 0, %s144
      %s162 = sphi 0, %s162
      %s164 = sphi 0, %s162
      %s165 = sphi 0, %s164
      %s179 = sphi 0, %s165
      %s183 = sphi 0, %s183
      %s185 = sphi 0, %s183
      %s186 = sphi 0, %s185
      %s200 = sphi 0, %s186
      %s204 = sphi 0, %s204
      %s206 = sphi 0, %s204
      %s207 = sphi 0, %s206
      %s221 = sphi 0, %s207
      %s225 = sphi 0, %s225
      %s227 = sphi 0, %s225
      %s228 = sphi 0, %s227
      %s242 = sphi 0, %s228
      %s246 = sphi 0, %s246
      %s248 = sphi 0, %s246
      %s249 = sphi 0, %s248
      %s263 = sphi 0, %s249
      %s267 = sphi 0, %s267
      %s269 = sphi 0, %s267
      %s270 = sphi 0, %s269
      %s284 = sphi 0, %s270
      %s288 = sphi 0, %s288
      %s290 = sphi 0, %s288
      %s291 = sphi 0, %s290
      %s305 = sphi 0, %s291
      %s311 = sphi 0, %s313
      %s314 = sphi 0, %s311
      %s315 = sphi 0, %s314
      %s331 = sphi 0, %s315
    $region4: #{tpu_custom_call.1} parent=1 // loop_header_branch
      %31 = sbr.rel (%p29) target = $region8
    $region5: #{tpu_custom_call.1} parent=1 // loop_body
      %s33 = ssub.s32 %s28, 1
      %s34 = ssub.s32 %s28, 2
      %s35 = sadd.s32 %s28, 1
      %s37 = sadd.s32 %s36, 1
      %p40 = scmp.eq.s32.totalorder %s28, 1
      %p41 = scmp.ne.s32.totalorder %s36, %s38
      %p42 = scmp.eq.s32.totalorder %s28, 0
      %p43 = por %p41, %p42
      %p44 = scmp.ne.s32.totalorder %s36, %s38
      %p45 = scmp.eq.s32.totalorder %s33, 1
      %p46 = por %p44, %p45
      %p47 = scmp.ne.s32.totalorder %s38, %s39
      %p48 = scmp.eq.s32.totalorder %s33, 0
      %p49 = por %p47, %p48
      %p50 = scmp.ne.s32.totalorder %s38, %s39
      %p51 = scmp.eq.s32.totalorder %s34, 1
      %p52 = por %p50, %p51
      %p54 = scmp.ne.s32.totalorder %s39, %s53
      %p55 = scmp.eq.s32.totalorder %s34, 0
      %p56 = por %p54, %p55
      %s58 = sadd.s32 %s57, 1
      %p61 = scmp.eq.s32.totalorder %s28, 1
      %p62 = scmp.ne.s32.totalorder %s57, %s59
      %p63 = scmp.eq.s32.totalorder %s28, 0
      %p64 = por %p62, %p63
      %p65 = scmp.ne.s32.totalorder %s57, %s59
      %p66 = scmp.eq.s32.totalorder %s33, 1
      %p67 = por %p65, %p66
      %p68 = scmp.ne.s32.totalorder %s59, %s60
      %p69 = scmp.eq.s32.totalorder %s33, 0
      %p70 = por %p68, %p69
      %p71 = scmp.ne.s32.totalorder %s59, %s60
      %p72 = scmp.eq.s32.totalorder %s34, 1
      %p73 = por %p71, %p72
      %p75 = scmp.ne.s32.totalorder %s60, %s74
      %p76 = scmp.eq.s32.totalorder %s34, 0
      %p77 = por %p75, %p76
      %s79 = sadd.s32 %s78, 1
      %p82 = scmp.eq.s32.totalorder %s28, 1
      %p83 = scmp.ne.s32.totalorder %s78, %s80
      %p84 = scmp.eq.s32.totalorder %s28, 0
      %p85 = por %p83, %p84
      %p86 = scmp.ne.s32.totalorder %s78, %s80
      %p87 = scmp.eq.s32.totalorder %s33, 1
      %p88 = por %p86, %p87
      %p89 = scmp.ne.s32.totalorder %s80, %s81
      %p90 = scmp.eq.s32.totalorder %s33, 0
      %p91 = por %p89, %p90
      %p92 = scmp.ne.s32.totalorder %s80, %s81
      %p93 = scmp.eq.s32.totalorder %s34, 1
      %p94 = por %p92, %p93
      %p96 = scmp.ne.s32.totalorder %s81, %s95
      %p97 = scmp.eq.s32.totalorder %s34, 0
      %p98 = por %p96, %p97
      %s100 = sadd.s32 %s99, 1
      %p103 = scmp.eq.s32.totalorder %s28, 1
      %p104 = scmp.ne.s32.totalorder %s99, %s101
      %p105 = scmp.eq.s32.totalorder %s28, 0
      %p106 = por %p104, %p105
      %p107 = scmp.ne.s32.totalorder %s99, %s101
      %p108 = scmp.eq.s32.totalorder %s33, 1
      %p109 = por %p107, %p108
      %p110 = scmp.ne.s32.totalorder %s101, %s102
      %p111 = scmp.eq.s32.totalorder %s33, 0
      %p112 = por %p110, %p111
      %p113 = scmp.ne.s32.totalorder %s101, %s102
      %p114 = scmp.eq.s32.totalorder %s34, 1
      %p115 = por %p113, %p114
      %p117 = scmp.ne.s32.totalorder %s102, %s116
      %p118 = scmp.eq.s32.totalorder %s34, 0
      %p119 = por %p117, %p118
      %s121 = sadd.s32 %s120, 1
      %p124 = scmp.eq.s32.totalorder %s28, 1
      %p125 = scmp.ne.s32.totalorder %s120, %s122
      %p126 = scmp.eq.s32.totalorder %s28, 0
      %p127 = por %p125, %p126
      %p128 = scmp.ne.s32.totalorder %s120, %s122
      %p129 = scmp.eq.s32.totalorder %s33, 1
      %p130 = por %p128, %p129
      %p131 = scmp.ne.s32.totalorder %s122, %s123
      %p132 = scmp.eq.s32.totalorder %s33, 0
      %p133 = por %p131, %p132
      %p134 = scmp.ne.s32.totalorder %s122, %s123
      %p135 = scmp.eq.s32.totalorder %s34, 1
      %p136 = por %p134, %p135
      %p138 = scmp.ne.s32.totalorder %s123, %s137
      %p139 = scmp.eq.s32.totalorder %s34, 0
      %p140 = por %p138, %p139
      %s142 = sadd.s32 %s141, 1
      %p145 = scmp.eq.s32.totalorder %s28, 1
      %p146 = scmp.ne.s32.totalorder %s141, %s143
      %p147 = scmp.eq.s32.totalorder %s28, 0
      %p148 = por %p146, %p147
      %p149 = scmp.ne.s32.totalorder %s141, %s143
      %p150 = scmp.eq.s32.totalorder %s33, 1
      %p151 = por %p149, %p150
      %p152 = scmp.ne.s32.totalorder %s143, %s144
      %p153 = scmp.eq.s32.totalorder %s33, 0
      %p154 = por %p152, %p153
      %p155 = scmp.ne.s32.totalorder %s143, %s144
      %p156 = scmp.eq.s32.totalorder %s34, 1
      %p157 = por %p155, %p156
      %p159 = scmp.ne.s32.totalorder %s144, %s158
      %p160 = scmp.eq.s32.totalorder %s34, 0
      %p161 = por %p159, %p160
      %s163 = sadd.s32 %s162, 1
      %p166 = scmp.eq.s32.totalorder %s28, 1
      %p167 = scmp.ne.s32.totalorder %s162, %s164
      %p168 = scmp.eq.s32.totalorder %s28, 0
      %p169 = por %p167, %p168
      %p170 = scmp.ne.s32.totalorder %s162, %s164
      %p171 = scmp.eq.s32.totalorder %s33, 1
      %p172 = por %p170, %p171
      %p173 = scmp.ne.s32.totalorder %s164, %s165
      %p174 = scmp.eq.s32.totalorder %s33, 0
      %p175 = por %p173, %p174
      %p176 = scmp.ne.s32.totalorder %s164, %s165
      %p177 = scmp.eq.s32.totalorder %s34, 1
      %p178 = por %p176, %p177
      %p180 = scmp.ne.s32.totalorder %s165, %s179
      %p181 = scmp.eq.s32.totalorder %s34, 0
      %p182 = por %p180, %p181
      %s184 = sadd.s32 %s183, 1
      %p187 = scmp.eq.s32.totalorder %s28, 1
      %p188 = scmp.ne.s32.totalorder %s183, %s185
      %p189 = scmp.eq.s32.totalorder %s28, 0
      %p190 = por %p188, %p189
      %p191 = scmp.ne.s32.totalorder %s183, %s185
      %p192 = scmp.eq.s32.totalorder %s33, 1
      %p193 = por %p191, %p192
      %p194 = scmp.ne.s32.totalorder %s185, %s186
      %p195 = scmp.eq.s32.totalorder %s33, 0
      %p196 = por %p194, %p195
      %p197 = scmp.ne.s32.totalorder %s185, %s186
      %p198 = scmp.eq.s32.totalorder %s34, 1
      %p199 = por %p197, %p198
      %p201 = scmp.ne.s32.totalorder %s186, %s200
      %p202 = scmp.eq.s32.totalorder %s34, 0
      %p203 = por %p201, %p202
      %s205 = sadd.s32 %s204, 1
      %p208 = scmp.eq.s32.totalorder %s28, 1
      %p209 = scmp.ne.s32.totalorder %s204, %s206
      %p210 = scmp.eq.s32.totalorder %s28, 0
      %p211 = por %p209, %p210
      %p212 = scmp.ne.s32.totalorder %s204, %s206
      %p213 = scmp.eq.s32.totalorder %s33, 1
      %p214 = por %p212, %p213
      %p215 = scmp.ne.s32.totalorder %s206, %s207
      %p216 = scmp.eq.s32.totalorder %s33, 0
      %p217 = por %p215, %p216
      %p218 = scmp.ne.s32.totalorder %s206, %s207
      %p219 = scmp.eq.s32.totalorder %s34, 1
      %p220 = por %p218, %p219
      %p222 = scmp.ne.s32.totalorder %s207, %s221
      %p223 = scmp.eq.s32.totalorder %s34, 0
      %p224 = por %p222, %p223
      %s226 = sadd.s32 %s225, 1
      %p229 = scmp.eq.s32.totalorder %s28, 1
      %p230 = scmp.ne.s32.totalorder %s225, %s227
      %p231 = scmp.eq.s32.totalorder %s28, 0
      %p232 = por %p230, %p231
      %p233 = scmp.ne.s32.totalorder %s225, %s227
      %p234 = scmp.eq.s32.totalorder %s33, 1
      %p235 = por %p233, %p234
      %p236 = scmp.ne.s32.totalorder %s227, %s228
      %p237 = scmp.eq.s32.totalorder %s33, 0
      %p238 = por %p236, %p237
      %p239 = scmp.ne.s32.totalorder %s227, %s228
      %p240 = scmp.eq.s32.totalorder %s34, 1
      %p241 = por %p239, %p240
      %p243 = scmp.ne.s32.totalorder %s228, %s242
      %p244 = scmp.eq.s32.totalorder %s34, 0
      %p245 = por %p243, %p244
      %s247 = sadd.s32 %s246, 1
      %p250 = scmp.eq.s32.totalorder %s28, 1
      %p251 = scmp.ne.s32.totalorder %s246, %s248
      %p252 = scmp.eq.s32.totalorder %s28, 0
      %p253 = por %p251, %p252
      %p254 = scmp.ne.s32.totalorder %s246, %s248
      %p255 = scmp.eq.s32.totalorder %s33, 1
      %p256 = por %p254, %p255
      %p257 = scmp.ne.s32.totalorder %s248, %s249
      %p258 = scmp.eq.s32.totalorder %s33, 0
      %p259 = por %p257, %p258
      %p260 = scmp.ne.s32.totalorder %s248, %s249
      %p261 = scmp.eq.s32.totalorder %s34, 1
      %p262 = por %p260, %p261
      %p264 = scmp.ne.s32.totalorder %s249, %s263
      %p265 = scmp.eq.s32.totalorder %s34, 0
      %p266 = por %p264, %p265
      %s268 = sadd.s32 %s267, 1
      %p271 = scmp.eq.s32.totalorder %s28, 1
      %p272 = scmp.ne.s32.totalorder %s267, %s269
      %p273 = scmp.eq.s32.totalorder %s28, 0
      %p274 = por %p272, %p273
      %p275 = scmp.ne.s32.totalorder %s267, %s269
      %p276 = scmp.eq.s32.totalorder %s33, 1
      %p277 = por %p275, %p276
      %p278 = scmp.ne.s32.totalorder %s269, %s270
      %p279 = scmp.eq.s32.totalorder %s33, 0
      %p280 = por %p278, %p279
      %p281 = scmp.ne.s32.totalorder %s269, %s270
      %p282 = scmp.eq.s32.totalorder %s34, 1
      %p283 = por %p281, %p282
      %p285 = scmp.ne.s32.totalorder %s270, %s284
      %p286 = scmp.eq.s32.totalorder %s34, 0
      %p287 = por %p285, %p286
      %s289 = sadd.s32 %s288, 1
      %p292 = scmp.eq.s32.totalorder %s28, 1
      %p293 = scmp.ne.s32.totalorder %s288, %s290
      %p294 = scmp.eq.s32.totalorder %s28, 0
      %p295 = por %p293, %p294
      %p296 = scmp.ne.s32.totalorder %s288, %s290
      %p297 = scmp.eq.s32.totalorder %s33, 1
      %p298 = por %p296, %p297
      %p299 = scmp.ne.s32.totalorder %s290, %s291
      %p300 = scmp.eq.s32.totalorder %s33, 0
      %p301 = por %p299, %p300
      %p302 = scmp.ne.s32.totalorder %s290, %s291
      %p303 = scmp.eq.s32.totalorder %s34, 1
      %p304 = por %p302, %p303
      %p306 = scmp.ne.s32.totalorder %s291, %s305
      %p307 = scmp.eq.s32.totalorder %s34, 0
      %p308 = por %p306, %p307
      %s309 = ssub.s32 %s28, %s35
      %p310 = scmp.eq.s32.totalorder %s309, 0
      %s312 = sadd.s32 %s311, 1
      %s313 = scalar_select %p310, %s311, %s312
      %p316 = pneg %p310
      %p317 = scmp.eq.s32.totalorder %s28, 1
      %p318 = por %p316, %p317
      %p319 = scmp.ne.s32.totalorder %s311, %s314
      %p320 = scmp.eq.s32.totalorder %s28, 0
      %p321 = por %p319, %p320
      %p322 = scmp.ne.s32.totalorder %s311, %s314
      %p323 = scmp.eq.s32.totalorder %s33, 1
      %p324 = por %p322, %p323
      %p325 = scmp.ne.s32.totalorder %s314, %s315
      %p326 = scmp.eq.s32.totalorder %s33, 0
      %p327 = por %p325, %p326
      %p328 = scmp.ne.s32.totalorder %s314, %s315
      %p329 = scmp.eq.s32.totalorder %s34, 1
      %p330 = por %p328, %p329
      %p332 = scmp.ne.s32.totalorder %s315, %s331
      %p333 = scmp.eq.s32.totalorder %s34, 0
      %p334 = por %p332, %p333
      %p335 = scmp.le.s32.totalorder 1, %s28
      %p336 = scmp.lt.s32.totalorder %s28, 3
      %p337 = pnand %p335, %p336
      %p338 = pneg %p337
      // Predicated region
      $region9: #{tpu_custom_call.1} parent=5 // pred_check
        _
      $region10: #{tpu_custom_call.1} parent=5 // pred_check_branch
        %340 = sbr.rel (%p337) target = $region12
      $region11: #{tpu_custom_call.1} parent=5 // pred_region
        %s341 = ssub.s32 %s28, 1
        // Predicated region
        $region13: #{tpu_custom_call.1} parent=11 // pred_check
          %p342 = pneg %p49
        $region14: #{tpu_custom_call.1} parent=11 // pred_check_branch
          %344 = sbr.rel (%p342) target = $region16
        $region15: #{tpu_custom_call.1} parent=11 // pred_region
          %346 = vsyncadd [#allocation5], 0
          %s348 = sshll.u32 %s0, 4
          %s349 = int_to_ptr.hbm [resolvable:$true] %s348
          %s350 = sshll.u32 [#allocation4], 4
          %s351 = int_to_ptr.vmem [resolvable:$true] %s350
          %353 = dma.hbm_to_vmem [thread:$0]  %s349, 32, %s351, [#allocation5]
        $region16: #{tpu_custom_call.1} parent=11 // pred_fallthru
          _
        // Predicated region
        $region17: #{tpu_custom_call.1} parent=11 // pred_check
          %p354 = pneg %p70
        $region18: #{tpu_custom_call.1} parent=11 // pred_check_branch
          %356 = sbr.rel (%p354) target = $region20
        $region19: #{tpu_custom_call.1} parent=11 // pred_region
          %358 = vsyncadd [#allocation8], 0
          %s359 = sshll.u32 %s1, 4
          %s360 = int_to_ptr.hbm [resolvable:$true] %s359
          %s361 = sshll.u32 [#allocation7], 4
          %s362 = int_to_ptr.vmem [resolvable:$true] %s361
          %367 = dma.hbm_to_vmem [thread:$0]  %s360, 512, %s362, [#allocation8], 128, 128, 8
        $region20: #{tpu_custom_call.1} parent=11 // pred_fallthru
          _
        // Predicated region
        $region21: #{tpu_custom_call.1} parent=11 // pred_check
          %p368 = pneg %p91
        $region22: #{tpu_custom_call.1} parent=11 // pred_check_branch
          %370 = sbr.rel (%p368) target = $region24
        $region23: #{tpu_custom_call.1} parent=11 // pred_region
          _
        $region24: #{tpu_custom_call.1} parent=11 // pred_fallthru
          _
        // Predicated region
        $region25: #{tpu_custom_call.1} parent=11 // pred_check
          %p371 = pneg %p112
        $region26: #{tpu_custom_call.1} parent=11 // pred_check_branch
          %373 = sbr.rel (%p371) target = $region28
        $region27: #{tpu_custom_call.1} parent=11 // pred_region
          %375 = vsyncadd [#allocation8], 0
          %s376 = sshll.u32 %s3, 4
          %s377 = int_to_ptr.hbm [resolvable:$true] %s376
          %s378 = sshll.u32 [#allocation9], 4
          %s379 = int_to_ptr.vmem [resolvable:$true] %s378
          %384 = dma.hbm_to_vmem [thread:$0]  %s377, 512, %s379, [#allocation8], 128, 128, 8
        $region28: #{tpu_custom_call.1} parent=11 // pred_fallthru
          _
        // Predicated region
        $region29: #{tpu_custom_call.1} parent=11 // pred_check
          %p385 = pneg %p133
        $region30: #{tpu_custom_call.1} parent=11 // pred_check_branch
          %387 = sbr.rel (%p385) target = $region32
        $region31: #{tpu_custom_call.1} parent=11 // pred_region
          %389 = vsyncadd [#allocation11], 0
          %s391 = sshll.u32 %s4, 4
          %s392 = int_to_ptr.hbm [resolvable:$true] %s391
          %s393 = sshll.u32 [#allocation10], 4
          %s394 = int_to_ptr.vmem [resolvable:$true] %s393
          %396 = dma.hbm_to_vmem [thread:$0]  %s392, 16, %s394, [#allocation11]
        $region32: #{tpu_custom_call.1} parent=11 // pred_fallthru
          _
        // Predicated region
        $region33: #{tpu_custom_call.1} parent=11 // pred_check
          %p397 = pneg %p154
        $region34: #{tpu_custom_call.1} parent=11 // pred_check_branch
          %399 = sbr.rel (%p397) target = $region36
        $region35: #{tpu_custom_call.1} parent=11 // pred_region
          %401 = vsyncadd [#allocation11], 0
          %s402 = sshll.u32 %s5, 4
          %s403 = int_to_ptr.hbm [resolvable:$true] %s402
          %s404 = sshll.u32 [#allocation12], 4
          %s405 = int_to_ptr.vmem [resolvable:$true] %s404
          %410 = dma.hbm_to_vmem [thread:$0]  %s403, 1024, %s405, [#allocation11], 128, 128, 8
        $region36: #{tpu_custom_call.1} parent=11 // pred_fallthru
          _
        // Predicated region
        $region37: #{tpu_custom_call.1} parent=11 // pred_check
          %p411 = pneg %p175
        $region38: #{tpu_custom_call.1} parent=11 // pred_check_branch
          %413 = sbr.rel (%p411) target = $region40
        $region39: #{tpu_custom_call.1} parent=11 // pred_region
          %415 = vsyncadd [#allocation14], 0
          %s417 = sshll.u32 %s6, 4
          %s418 = int_to_ptr.hbm [resolvable:$true] %s417
          %s419 = sshll.u32 [#allocation13], 4
          %s420 = int_to_ptr.vmem [resolvable:$true] %s419
          %422 = dma.hbm_to_vmem [thread:$0]  %s418, 16, %s420, [#allocation14]
        $region40: #{tpu_custom_call.1} parent=11 // pred_fallthru
          _
        // Predicated region
        $region41: #{tpu_custom_call.1} parent=11 // pred_check
          %p423 = pneg %p196
        $region42: #{tpu_custom_call.1} parent=11 // pred_check_branch
          %425 = sbr.rel (%p423) target = $region44
        $region43: #{tpu_custom_call.1} parent=11 // pred_region
          %427 = vsyncadd [#allocation14], 0
          %s428 = sshll.u32 %s7, 4
          %s429 = int_to_ptr.hbm [resolvable:$true] %s428
          %s430 = sshll.u32 [#allocation15], 4
          %s431 = int_to_ptr.vmem [resolvable:$true] %s430
          %436 = dma.hbm_to_vmem [thread:$0]  %s429, 2048, %s431, [#allocation14], 128, 128, 8
        $region44: #{tpu_custom_call.1} parent=11 // pred_fallthru
          _
        // Predicated region
        $region45: #{tpu_custom_call.1} parent=11 // pred_check
          %p437 = pneg %p217
        $region46: #{tpu_custom_call.1} parent=11 // pred_check_branch
          %439 = sbr.rel (%p437) target = $region48
        $region47: #{tpu_custom_call.1} parent=11 // pred_region
          %441 = vsyncadd [#allocation17], 0
          %s443 = sshll.u32 %s8, 4
          %s444 = int_to_ptr.hbm [resolvable:$true] %s443
          %s445 = sshll.u32 [#allocation16], 4
          %s446 = int_to_ptr.vmem [resolvable:$true] %s445
          %448 = dma.hbm_to_vmem [thread:$0]  %s444, 16, %s446, [#allocation17]
        $region48: #{tpu_custom_call.1} parent=11 // pred_fallthru
          _
        // Predicated region
        $region49: #{tpu_custom_call.1} parent=11 // pred_check
          %p449 = pneg %p238
        $region50: #{tpu_custom_call.1} parent=11 // pred_check_branch
          %451 = sbr.rel (%p449) target = $region52
        $region51: #{tpu_custom_call.1} parent=11 // pred_region
          %453 = vsyncadd [#allocation17], 0
          %s454 = sshll.u32 %s9, 4
          %s455 = int_to_ptr.hbm [resolvable:$true] %s454
          %s456 = sshll.u32 [#allocation18], 4
          %s457 = int_to_ptr.vmem [resolvable:$true] %s456
          %462 = dma.hbm_to_vmem [thread:$0]  %s455, 8192, %s457, [#allocation17], 1024, 1024, 64
        $region52: #{tpu_custom_call.1} parent=11 // pred_fallthru
          _
        // Predicated region
        $region53: #{tpu_custom_call.1} parent=11 // pred_check
          %p463 = pneg %p259
        $region54: #{tpu_custom_call.1} parent=11 // pred_check_branch
          %465 = sbr.rel (%p463) target = $region56
        $region55: #{tpu_custom_call.1} parent=11 // pred_region
          _
        $region56: #{tpu_custom_call.1} parent=11 // pred_fallthru
          _
        // Predicated region
        $region57: #{tpu_custom_call.1} parent=11 // pred_check
          %p466 = pneg %p280
        $region58: #{tpu_custom_call.1} parent=11 // pred_check_branch
          %468 = sbr.rel (%p466) target = $region60
        $region59: #{tpu_custom_call.1} parent=11 // pred_region
          %470 = vsyncadd [#allocation20], 0
          %s471 = sshll.u32 %s11, 4
          %s472 = int_to_ptr.hbm [resolvable:$true] %s471
          %s473 = sshll.u32 [#allocation19], 4
          %s474 = int_to_ptr.vmem [resolvable:$true] %s473
          %479 = dma.hbm_to_vmem [thread:$0]  %s472, 8192, %s474, [#allocation20], 1024, 1024, 64
        $region60: #{tpu_custom_call.1} parent=11 // pred_fallthru
          _
        // Predicated region
        $region61: #{tpu_custom_call.1} parent=11 // pred_check
          %p480 = pneg %p301
        $region62: #{tpu_custom_call.1} parent=11 // pred_check_branch
          %482 = sbr.rel (%p480) target = $region64
        $region63: #{tpu_custom_call.1} parent=11 // pred_region
          %484 = vsyncadd [#allocation20], 0
          %s486 = sshll.u32 %s12, 4
          %s487 = int_to_ptr.hbm [resolvable:$true] %s486
          %s488 = sshll.u32 [#allocation21], 4
          %s489 = int_to_ptr.vmem [resolvable:$true] %s488
          %491 = dma.hbm_to_vmem [thread:$0]  %s487, 128, %s489, [#allocation20]
        $region64: #{tpu_custom_call.1} parent=11 // pred_fallthru
          _
      $region12: #{tpu_custom_call.1} parent=5 // pred_fallthru
        _
      %p492 = scmp.lt.s32.totalorder %s28, 2
      // Predicated region
      $region65: #{tpu_custom_call.1} parent=5 // pred_check
        %p493 = pneg %p492
      $region66: #{tpu_custom_call.1} parent=5 // pred_check_branch
        %495 = sbr.rel (%p493) target = $region68
      $region67: #{tpu_custom_call.1} parent=5 // pred_region
        _
      $region68: #{tpu_custom_call.1} parent=5 // pred_fallthru
        _
      %p496 = scmp.le.s32.totalorder 1, %s28
      %p497 = scmp.lt.s32.totalorder %s28, 3
      %p498 = pnand %p496, %p497
      %p499 = pneg %p498
      // Predicated region
      $region69: #{tpu_custom_call.1} parent=5 // pred_check
        _
      $region70: #{tpu_custom_call.1} parent=5 // pred_check_branch
        %501 = sbr.rel (%p498) target = $region72
      $region71: #{tpu_custom_call.1} parent=5 // pred_region
        %s502 = ssub.s32 %s28, 1
        // Predicated region
        $region73: #{tpu_custom_call.1} parent=71 // pred_check
          %p503 = pneg %p49
        $region74: #{tpu_custom_call.1} parent=71 // pred_check_branch
          %505 = sbr.rel (%p503) target = $region76
        $region75: #{tpu_custom_call.1} parent=71 // pred_region
          %507 = dma.done [#allocation5], 32
        $region76: #{tpu_custom_call.1} parent=71 // pred_fallthru
          _
        // Predicated region
        $region77: #{tpu_custom_call.1} parent=71 // pred_check
          %p508 = pneg %p70
        $region78: #{tpu_custom_call.1} parent=71 // pred_check_branch
          %510 = sbr.rel (%p508) target = $region80
        $region79: #{tpu_custom_call.1} parent=71 // pred_region
          %512 = dma.done [#allocation8], 512
        $region80: #{tpu_custom_call.1} parent=71 // pred_fallthru
          _
        // Predicated region
        $region81: #{tpu_custom_call.1} parent=71 // pred_check
          %p513 = pneg %p112
        $region82: #{tpu_custom_call.1} parent=71 // pred_check_branch
          %515 = sbr.rel (%p513) target = $region84
        $region83: #{tpu_custom_call.1} parent=71 // pred_region
          %517 = dma.done [#allocation8], 512
        $region84: #{tpu_custom_call.1} parent=71 // pred_fallthru
          _
        // Predicated region
        $region85: #{tpu_custom_call.1} parent=71 // pred_check
          %p518 = pneg %p133
        $region86: #{tpu_custom_call.1} parent=71 // pred_check_branch
          %520 = sbr.rel (%p518) target = $region88
        $region87: #{tpu_custom_call.1} parent=71 // pred_region
          %522 = dma.done [#allocation11], 16
        $region88: #{tpu_custom_call.1} parent=71 // pred_fallthru
          _
        // Predicated region
        $region89: #{tpu_custom_call.1} parent=71 // pred_check
          %p523 = pneg %p154
        $region90: #{tpu_custom_call.1} parent=71 // pred_check_branch
          %525 = sbr.rel (%p523) target = $region92
        $region91: #{tpu_custom_call.1} parent=71 // pred_region
          %527 = dma.done [#allocation11], 1024
        $region92: #{tpu_custom_call.1} parent=71 // pred_fallthru
          _
        // Predicated region
        $region93: #{tpu_custom_call.1} parent=71 // pred_check
          %p528 = pneg %p175
        $region94: #{tpu_custom_call.1} parent=71 // pred_check_branch
          %530 = sbr.rel (%p528) target = $region96
        $region95: #{tpu_custom_call.1} parent=71 // pred_region
          %532 = dma.done [#allocation14], 16
        $region96: #{tpu_custom_call.1} parent=71 // pred_fallthru
          _
        // Predicated region
        $region97: #{tpu_custom_call.1} parent=71 // pred_check
          %p533 = pneg %p196
        $region98: #{tpu_custom_call.1} parent=71 // pred_check_branch
          %535 = sbr.rel (%p533) target = $region100
        $region99: #{tpu_custom_call.1} parent=71 // pred_region
          %537 = dma.done [#allocation14], 2048
        $region100: #{tpu_custom_call.1} parent=71 // pred_fallthru
          _
        // Predicated region
        $region101: #{tpu_custom_call.1} parent=71 // pred_check
          %p538 = pneg %p217
        $region102: #{tpu_custom_call.1} parent=71 // pred_check_branch
          %540 = sbr.rel (%p538) target = $region104
        $region103: #{tpu_custom_call.1} parent=71 // pred_region
          %542 = dma.done [#allocation17], 16
        $region104: #{tpu_custom_call.1} parent=71 // pred_fallthru
          _
        // Predicated region
        $region105: #{tpu_custom_call.1} parent=71 // pred_check
          %p543 = pneg %p238
        $region106: #{tpu_custom_call.1} parent=71 // pred_check_branch
          %545 = sbr.rel (%p543) target = $region108
        $region107: #{tpu_custom_call.1} parent=71 // pred_region
          %547 = dma.done [#allocation17], 8192
        $region108: #{tpu_custom_call.1} parent=71 // pred_fallthru
          _
        // Predicated region
        $region109: #{tpu_custom_call.1} parent=71 // pred_check
          %p548 = pneg %p280
        $region110: #{tpu_custom_call.1} parent=71 // pred_check_branch
          %550 = sbr.rel (%p548) target = $region112
        $region111: #{tpu_custom_call.1} parent=71 // pred_region
          %552 = dma.done [#allocation20], 8192
        $region112: #{tpu_custom_call.1} parent=71 // pred_fallthru
          _
        // Predicated region
        $region113: #{tpu_custom_call.1} parent=71 // pred_check
          %p553 = pneg %p301
        $region114: #{tpu_custom_call.1} parent=71 // pred_check_branch
          %555 = sbr.rel (%p553) target = $region116
        $region115: #{tpu_custom_call.1} parent=71 // pred_region
          %557 = dma.done [#allocation20], 128
        $region116: #{tpu_custom_call.1} parent=71 // pred_fallthru
          _
        %p558 = pneg %p49
        %p559 = pneg %p46
        %p560 = pneg %p70
        %p561 = pneg %p67
        %p562 = pneg %p91
        %p563 = pneg %p88
        %p564 = pneg %p112
        %p565 = pneg %p109
        %p566 = pneg %p133
        %p567 = pneg %p130
        %p568 = pneg %p154
        %p569 = pneg %p151
        %p570 = pneg %p175
        %p571 = pneg %p172
        %p572 = pneg %p196
        %p573 = pneg %p193
        %p574 = pneg %p217
        %p575 = pneg %p214
        %p576 = pneg %p238
        %p577 = pneg %p235
        %p578 = pneg %p259
        %p579 = pneg %p256
        %p580 = pneg %p280
        %p581 = pneg %p277
        %p582 = pneg %p301
        %p583 = pneg %p298
        %p584 = pneg %p327
        %p585 = pneg %p324
        %s586 = sand.u32 %s314, 1
        %s587 = scalar_lea.sflag [#allocation6], %s586
        %s588 = sand.u32 %s314, 1
        %s589 = smul.addr %s588, 256
        %s590 = scalar_lea.vmem [#allocation22], %s589
        %s591 = scalar_lea.vmem [#allocation4], %s33
        %v592 = vld [vmem:[%s591] sm:$0x1]
        %v593 = vld [vmem:[#allocation7] sm:$0xff]
        %v594 = vld [vmem:[#allocation7 + $0x8] sm:$0xff]
        %v595 = vld [vmem:[#allocation7 + $0x10] sm:$0xff]
        %v596 = vld [vmem:[#allocation7 + $0x18] sm:$0xff]
        %v597 = vld [vmem:[%s2] sm:$0x1]
        %vm598 = vcmask 261120
        %v600 = vsel %vm598, %v592, 0
        %602 = vmatpush.msra.mxu0 0.0
        %603 = vmatpush.msra.mxu0 0.0
        %604 = vmatpush.msra.mxu0 0.0
        %605 = vmatpush.msra.mxu0 0.0
        %606 = vmatpush.msra.mxu0 0.0
        %607 = vmatpush.msra.mxu0 0.0
        %608 = vmatpush.msra.mxu0 0.0
        %609 = vmatpush.msra.mxu0 0.0
        %610 = vmatpush.msra.mxu0 0.0
        %611 = vmatpush.msra.mxu0 0.0
        %612 = vmatpush.msra.mxu0 0.0
        %613 = vmatpush.msra.mxu0 0.0
        %614 = vmatpush.msra.mxu0 %v596
        %615 = vmatpush.msra.mxu0 %v595
        %616 = vmatpush.msra.mxu0 %v594
        %617 = vmatpush.msra.mxu0 %v593
        %618 = vmatmul.f32.gmra.mxu0 %v600
        %v619 = vpop.f32.mrf.mxu0
        %v620 = vadd.f32 %v597, %v619
        %621 = vdwg.mxu0
        %v622 = vmax.f32 %v620, 0.0
        %v623 = vld [vmem:[#allocation9] sm:$0xff]
        %v624 = vld [vmem:[#allocation9 + $0x8] sm:$0xff]
        %v625 = vld [vmem:[#allocation9 + $0x10] sm:$0xff]
        %v626 = vld [vmem:[#allocation9 + $0x18] sm:$0xff]
        %v627 = vld [vmem:[#allocation10] sm:$0x1]
        %v629 = vsel %vm598, %v622, 0
        %631 = vmatpush.msra.mxu0 0.0
        %632 = vmatpush.msra.mxu0 0.0
        %633 = vmatpush.msra.mxu0 0.0
        %634 = vmatpush.msra.mxu0 0.0
        %635 = vmatpush.msra.mxu0 0.0
        %636 = vmatpush.msra.mxu0 0.0
        %637 = vmatpush.msra.mxu0 0.0
        %638 = vmatpush.msra.mxu0 0.0
        %639 = vmatpush.msra.mxu0 0.0
        %640 = vmatpush.msra.mxu0 0.0
        %641 = vmatpush.msra.mxu0 0.0
        %642 = vmatpush.msra.mxu0 0.0
        %643 = vmatpush.msra.mxu0 %v626
        %644 = vmatpush.msra.mxu0 %v625
        %645 = vmatpush.msra.mxu0 %v624
        %646 = vmatpush.msra.mxu0 %v623
        %647 = vmatmul.f32.gmra.mxu0 %v629
        %v648 = vpop.f32.mrf.mxu0
        %v649 = vadd.f32 %v627, %v648
        %650 = vdwg.mxu0
        %v651 = vmax.f32 %v649, 0.0
        %v652 = vld [vmem:[#allocation12] sm:$0xff]
        %v653 = vld [vmem:[#allocation12 + $0x8] sm:$0xff]
        %v654 = vld [vmem:[#allocation12 + $0x10] sm:$0xff]
        %v655 = vld [vmem:[#allocation12 + $0x18] sm:$0xff]
        %v656 = vld [vmem:[#allocation12 + $0x20] sm:$0xff]
        %v657 = vld [vmem:[#allocation12 + $0x28] sm:$0xff]
        %v658 = vld [vmem:[#allocation12 + $0x30] sm:$0xff]
        %v659 = vld [vmem:[#allocation12 + $0x38] sm:$0xff]
        %v660 = vld [vmem:[#allocation13] sm:$0x1]
        %vm661 = vcmask 523264
        %v663 = vsel %vm661, %v651, 0
        %665 = vmatpush.msra.mxu0 0.0
        %666 = vmatpush.msra.mxu0 0.0
        %667 = vmatpush.msra.mxu0 0.0
        %668 = vmatpush.msra.mxu0 0.0
        %669 = vmatpush.msra.mxu0 0.0
        %670 = vmatpush.msra.mxu0 0.0
        %671 = vmatpush.msra.mxu0 0.0
        %672 = vmatpush.msra.mxu0 0.0
        %673 = vmatpush.msra.mxu0 %v659
        %674 = vmatpush.msra.mxu0 %v658
        %675 = vmatpush.msra.mxu0 %v657
        %676 = vmatpush.msra.mxu0 %v656
        %677 = vmatpush.msra.mxu0 %v655
        %678 = vmatpush.msra.mxu0 %v654
        %679 = vmatpush.msra.mxu0 %v653
        %680 = vmatpush.msra.mxu0 %v652
        %681 = vmatmul.f32.gmra.mxu0 %v663
        %v682 = vpop.f32.mrf.mxu0
        %v683 = vadd.f32 %v660, %v682
        %684 = vdwg.mxu0
        %v685 = vmax.f32 %v683, 0.0
        %v686 = vld [vmem:[#allocation15] sm:$0xff]
        %v687 = vld [vmem:[#allocation15 + $0x8] sm:$0xff]
        %v688 = vld [vmem:[#allocation15 + $0x10] sm:$0xff]
        %v689 = vld [vmem:[#allocation15 + $0x18] sm:$0xff]
        %v690 = vld [vmem:[#allocation15 + $0x20] sm:$0xff]
        %v691 = vld [vmem:[#allocation15 + $0x28] sm:$0xff]
        %v692 = vld [vmem:[#allocation15 + $0x30] sm:$0xff]
        %v693 = vld [vmem:[#allocation15 + $0x38] sm:$0xff]
        %v694 = vld [vmem:[#allocation15 + $0x40] sm:$0xff]
        %v695 = vld [vmem:[#allocation15 + $0x48] sm:$0xff]
        %v696 = vld [vmem:[#allocation15 + $0x50] sm:$0xff]
        %v697 = vld [vmem:[#allocation15 + $0x58] sm:$0xff]
        %v698 = vld [vmem:[#allocation15 + $0x60] sm:$0xff]
        %v699 = vld [vmem:[#allocation15 + $0x68] sm:$0xff]
        %v700 = vld [vmem:[#allocation15 + $0x70] sm:$0xff]
        %v701 = vld [vmem:[#allocation15 + $0x78] sm:$0xff]
        %v702 = vld [vmem:[#allocation16] sm:$0x1]
        %703 = vmatpush.msra.mxu0 %v701
        %704 = vmatpush.msra.mxu0 %v700
        %705 = vmatpush.msra.mxu0 %v699
        %706 = vmatpush.msra.mxu0 %v698
        %707 = vmatpush.msra.mxu0 %v697
        %708 = vmatpush.msra.mxu0 %v696
        %709 = vmatpush.msra.mxu0 %v695
        %710 = vmatpush.msra.mxu0 %v694
        %711 = vmatpush.msra.mxu0 %v693
        %712 = vmatpush.msra.mxu0 %v692
        %713 = vmatpush.msra.mxu0 %v691
        %714 = vmatpush.msra.mxu0 %v690
        %715 = vmatpush.msra.mxu0 %v689
        %716 = vmatpush.msra.mxu0 %v688
        %717 = vmatpush.msra.mxu0 %v687
        %718 = vmatpush.msra.mxu0 %v686
        %719 = vmatmul.f32.gmra.mxu0 %v685
        %v720 = vpop.f32.mrf.mxu0
        %v721 = vadd.f32 %v702, %v720
        %722 = vdwg.mxu0
        %v723 = vmax.f32 %v721, 0.0
        %v724 = vld [vmem:[#allocation18] sm:$0xff]
        %v725 = vld [vmem:[#allocation18 + $0x8] sm:$0xff]
        %v726 = vld [vmem:[#allocation18 + $0x10] sm:$0xff]
        %v727 = vld [vmem:[#allocation18 + $0x18] sm:$0xff]
        %v728 = vld [vmem:[#allocation18 + $0x20] sm:$0xff]
        %v729 = vld [vmem:[#allocation18 + $0x28] sm:$0xff]
        %v730 = vld [vmem:[#allocation18 + $0x30] sm:$0xff]
        %v731 = vld [vmem:[#allocation18 + $0x38] sm:$0xff]
        %v732 = vld [vmem:[#allocation18 + $0x40] sm:$0xff]
        %v733 = vld [vmem:[#allocation18 + $0x48] sm:$0xff]
        %v734 = vld [vmem:[#allocation18 + $0x50] sm:$0xff]
        %v735 = vld [vmem:[#allocation18 + $0x58] sm:$0xff]
        %v736 = vld [vmem:[#allocation18 + $0x60] sm:$0xff]
        %v737 = vld [vmem:[#allocation18 + $0x68] sm:$0xff]
        %v738 = vld [vmem:[#allocation18 + $0x70] sm:$0xff]
        %v739 = vld [vmem:[#allocation18 + $0x78] sm:$0xff]
        %v740 = vld [vmem:[#allocation18 + $0x80] sm:$0xff]
        %v741 = vld [vmem:[#allocation18 + $0x88] sm:$0xff]
        %v742 = vld [vmem:[#allocation18 + $0x90] sm:$0xff]
        %v743 = vld [vmem:[#allocation18 + $0x98] sm:$0xff]
        %v744 = vld [vmem:[#allocation18 + $0xa0] sm:$0xff]
        %v745 = vld [vmem:[#allocation18 + $0xa8] sm:$0xff]
        %v746 = vld [vmem:[#allocation18 + $0xb0] sm:$0xff]
        %v747 = vld [vmem:[#allocation18 + $0xb8] sm:$0xff]
        %v748 = vld [vmem:[#allocation18 + $0xc0] sm:$0xff]
        %v749 = vld [vmem:[#allocation18 + $0xc8] sm:$0xff]
        %v750 = vld [vmem:[#allocation18 + $0xd0] sm:$0xff]
        %v751 = vld [vmem:[#allocation18 + $0xd8] sm:$0xff]
        %v752 = vld [vmem:[#allocation18 + $0xe0] sm:$0xff]
        %v753 = vld [vmem:[#allocation18 + $0xe8] sm:$0xff]
        %v754 = vld [vmem:[#allocation18 + $0xf0] sm:$0xff]
        %v755 = vld [vmem:[#allocation18 + $0xf8] sm:$0xff]
        %v756 = vld [vmem:[#allocation18 + $0x100] sm:$0xff]
        %v757 = vld [vmem:[#allocation18 + $0x108] sm:$0xff]
        %v758 = vld [vmem:[#allocation18 + $0x110] sm:$0xff]
        %v759 = vld [vmem:[#allocation18 + $0x118] sm:$0xff]
        %v760 = vld [vmem:[#allocation18 + $0x120] sm:$0xff]
        %v761 = vld [vmem:[#allocation18 + $0x128] sm:$0xff]
        %v762 = vld [vmem:[#allocation18 + $0x130] sm:$0xff]
        %v763 = vld [vmem:[#allocation18 + $0x138] sm:$0xff]
        %v764 = vld [vmem:[#allocation18 + $0x140] sm:$0xff]
        %v765 = vld [vmem:[#allocation18 + $0x148] sm:$0xff]
        %v766 = vld [vmem:[#allocation18 + $0x150] sm:$0xff]
        %v767 = vld [vmem:[#allocation18 + $0x158] sm:$0xff]
        %v768 = vld [vmem:[#allocation18 + $0x160] sm:$0xff]
        %v769 = vld [vmem:[#allocation18 + $0x168] sm:$0xff]
        %v770 = vld [vmem:[#allocation18 + $0x170] sm:$0xff]
        %v771 = vld [vmem:[#allocation18 + $0x178] sm:$0xff]
        %v772 = vld [vmem:[#allocation18 + $0x180] sm:$0xff]
        %v773 = vld [vmem:[#allocation18 + $0x188] sm:$0xff]
        %v774 = vld [vmem:[#allocation18 + $0x190] sm:$0xff]
        %v775 = vld [vmem:[#allocation18 + $0x198] sm:$0xff]
        %v776 = vld [vmem:[#allocation18 + $0x1a0] sm:$0xff]
        %v777 = vld [vmem:[#allocation18 + $0x1a8] sm:$0xff]
        %v778 = vld [vmem:[#allocation18 + $0x1b0] sm:$0xff]
        %v779 = vld [vmem:[#allocation18 + $0x1b8] sm:$0xff]
        %v780 = vld [vmem:[#allocation18 + $0x1c0] sm:$0xff]
        %v781 = vld [vmem:[#allocation18 + $0x1c8] sm:$0xff]
        %v782 = vld [vmem:[#allocation18 + $0x1d0] sm:$0xff]
        %v783 = vld [vmem:[#allocation18 + $0x1d8] sm:$0xff]
        %v784 = vld [vmem:[#allocation18 + $0x1e0] sm:$0xff]
        %v785 = vld [vmem:[#allocation18 + $0x1e8] sm:$0xff]
        %v786 = vld [vmem:[#allocation18 + $0x1f0] sm:$0xff]
        %v787 = vld [vmem:[#allocation18 + $0x1f8] sm:$0xff]
        %v788 = vld [vmem:[%s10] sm:$0xff]
        %v790 = vperm.slane %v788, 0
        %v791 = vperm.slane %v788, 1
        %v792 = vperm.slane %v788, 2
        %v793 = vperm.slane %v788, 3
        %v794 = vperm.slane %v788, 4
        %v795 = vperm.slane %v788, 5
        %v796 = vperm.slane %v788, 6
        %v797 = vperm.slane %v788, 7
        %v807 = vsel %vm661, %v723, 0
        %809 = vmatpush.msra.mxu0 0.0
        %810 = vmatpush.msra.mxu0 0.0
        %811 = vmatpush.msra.mxu0 0.0
        %812 = vmatpush.msra.mxu0 0.0
        %813 = vmatpush.msra.mxu0 0.0
        %814 = vmatpush.msra.mxu0 0.0
        %815 = vmatpush.msra.mxu0 0.0
        %816 = vmatpush.msra.mxu0 0.0
        %817 = vmatpush.msra.mxu0 %v780
        %818 = vmatpush.msra.mxu0 %v772
        %819 = vmatpush.msra.mxu0 %v764
        %820 = vmatpush.msra.mxu0 %v756
        %821 = vmatpush.msra.mxu0 %v748
        %822 = vmatpush.msra.mxu0 %v740
        %823 = vmatpush.msra.mxu0 %v732
        %824 = vmatpush.msra.mxu0 %v724
        %825 = vmatmul.f32.gmra.mxu0 %v807
        %v826 = vpop.f32.mrf.mxu0
        %v827 = vadd.f32 %v790, %v826
        %828 = vdwg.mxu0
        %829 = vmatpush.msra.mxu0 0.0
        %830 = vmatpush.msra.mxu0 0.0
        %831 = vmatpush.msra.mxu0 0.0
        %832 = vmatpush.msra.mxu0 0.0
        %833 = vmatpush.msra.mxu0 0.0
        %834 = vmatpush.msra.mxu0 0.0
        %835 = vmatpush.msra.mxu0 0.0
        %836 = vmatpush.msra.mxu0 0.0
        %837 = vmatpush.msra.mxu0 %v781
        %838 = vmatpush.msra.mxu0 %v773
        %839 = vmatpush.msra.mxu0 %v765
        %840 = vmatpush.msra.mxu0 %v757
        %841 = vmatpush.msra.mxu0 %v749
        %842 = vmatpush.msra.mxu0 %v741
        %843 = vmatpush.msra.mxu0 %v733
        %844 = vmatpush.msra.mxu0 %v725
        %845 = vmatmul.f32.gmra.mxu0 %v807
        %v846 = vpop.f32.mrf.mxu0
        %v847 = vadd.f32 %v791, %v846
        %848 = vdwg.mxu0
        %849 = vmatpush.msra.mxu0 0.0
        %850 = vmatpush.msra.mxu0 0.0
        %851 = vmatpush.msra.mxu0 0.0
        %852 = vmatpush.msra.mxu0 0.0
        %853 = vmatpush.msra.mxu0 0.0
        %854 = vmatpush.msra.mxu0 0.0
        %855 = vmatpush.msra.mxu0 0.0
        %856 = vmatpush.msra.mxu0 0.0
        %857 = vmatpush.msra.mxu0 %v782
        %858 = vmatpush.msra.mxu0 %v774
        %859 = vmatpush.msra.mxu0 %v766
        %860 = vmatpush.msra.mxu0 %v758
        %861 = vmatpush.msra.mxu0 %v750
        %862 = vmatpush.msra.mxu0 %v742
        %863 = vmatpush.msra.mxu0 %v734
        %864 = vmatpush.msra.mxu0 %v726
        %865 = vmatmul.f32.gmra.mxu0 %v807
        %v866 = vpop.f32.mrf.mxu0
        %v867 = vadd.f32 %v792, %v866
        %868 = vdwg.mxu0
        %869 = vmatpush.msra.mxu0 0.0
        %870 = vmatpush.msra.mxu0 0.0
        %871 = vmatpush.msra.mxu0 0.0
        %872 = vmatpush.msra.mxu0 0.0
        %873 = vmatpush.msra.mxu0 0.0
        %874 = vmatpush.msra.mxu0 0.0
        %875 = vmatpush.msra.mxu0 0.0
        %876 = vmatpush.msra.mxu0 0.0
        %877 = vmatpush.msra.mxu0 %v783
        %878 = vmatpush.msra.mxu0 %v775
        %879 = vmatpush.msra.mxu0 %v767
        %880 = vmatpush.msra.mxu0 %v759
        %881 = vmatpush.msra.mxu0 %v751
        %882 = vmatpush.msra.mxu0 %v743
        %883 = vmatpush.msra.mxu0 %v735
        %884 = vmatpush.msra.mxu0 %v727
        %885 = vmatmul.f32.gmra.mxu0 %v807
        %v886 = vpop.f32.mrf.mxu0
        %v887 = vadd.f32 %v793, %v886
        %888 = vdwg.mxu0
        %889 = vmatpush.msra.mxu0 0.0
        %890 = vmatpush.msra.mxu0 0.0
        %891 = vmatpush.msra.mxu0 0.0
        %892 = vmatpush.msra.mxu0 0.0
        %893 = vmatpush.msra.mxu0 0.0
        %894 = vmatpush.msra.mxu0 0.0
        %895 = vmatpush.msra.mxu0 0.0
        %896 = vmatpush.msra.mxu0 0.0
        %897 = vmatpush.msra.mxu0 %v784
        %898 = vmatpush.msra.mxu0 %v776
        %899 = vmatpush.msra.mxu0 %v768
        %900 = vmatpush.msra.mxu0 %v760
        %901 = vmatpush.msra.mxu0 %v752
        %902 = vmatpush.msra.mxu0 %v744
        %903 = vmatpush.msra.mxu0 %v736
        %904 = vmatpush.msra.mxu0 %v728
        %905 = vmatmul.f32.gmra.mxu0 %v807
        %v906 = vpop.f32.mrf.mxu0
        %v907 = vadd.f32 %v794, %v906
        %908 = vdwg.mxu0
        %909 = vmatpush.msra.mxu0 0.0
        %910 = vmatpush.msra.mxu0 0.0
        %911 = vmatpush.msra.mxu0 0.0
        %912 = vmatpush.msra.mxu0 0.0
        %913 = vmatpush.msra.mxu0 0.0
        %914 = vmatpush.msra.mxu0 0.0
        %915 = vmatpush.msra.mxu0 0.0
        %916 = vmatpush.msra.mxu0 0.0
        %917 = vmatpush.msra.mxu0 %v785
        %918 = vmatpush.msra.mxu0 %v777
        %919 = vmatpush.msra.mxu0 %v769
        %920 = vmatpush.msra.mxu0 %v761
        %921 = vmatpush.msra.mxu0 %v753
        %922 = vmatpush.msra.mxu0 %v745
        %923 = vmatpush.msra.mxu0 %v737
        %924 = vmatpush.msra.mxu0 %v729
        %925 = vmatmul.f32.gmra.mxu0 %v807
        %v926 = vpop.f32.mrf.mxu0
        %v927 = vadd.f32 %v795, %v926
        %928 = vdwg.mxu0
        %929 = vmatpush.msra.mxu0 0.0
        %930 = vmatpush.msra.mxu0 0.0
        %931 = vmatpush.msra.mxu0 0.0
        %932 = vmatpush.msra.mxu0 0.0
        %933 = vmatpush.msra.mxu0 0.0
        %934 = vmatpush.msra.mxu0 0.0
        %935 = vmatpush.msra.mxu0 0.0
        %936 = vmatpush.msra.mxu0 0.0
        %937 = vmatpush.msra.mxu0 %v786
        %938 = vmatpush.msra.mxu0 %v778
        %939 = vmatpush.msra.mxu0 %v770
        %940 = vmatpush.msra.mxu0 %v762
        %941 = vmatpush.msra.mxu0 %v754
        %942 = vmatpush.msra.mxu0 %v746
        %943 = vmatpush.msra.mxu0 %v738
        %944 = vmatpush.msra.mxu0 %v730
        %945 = vmatmul.f32.gmra.mxu0 %v807
        %v946 = vpop.f32.mrf.mxu0
        %v947 = vadd.f32 %v796, %v946
        %948 = vdwg.mxu0
        %949 = vmatpush.msra.mxu0 0.0
        %950 = vmatpush.msra.mxu0 0.0
        %951 = vmatpush.msra.mxu0 0.0
        %952 = vmatpush.msra.mxu0 0.0
        %953 = vmatpush.msra.mxu0 0.0
        %954 = vmatpush.msra.mxu0 0.0
        %955 = vmatpush.msra.mxu0 0.0
        %956 = vmatpush.msra.mxu0 0.0
        %957 = vmatpush.msra.mxu0 %v787
        %958 = vmatpush.msra.mxu0 %v779
        %959 = vmatpush.msra.mxu0 %v771
        %960 = vmatpush.msra.mxu0 %v763
        %961 = vmatpush.msra.mxu0 %v755
        %962 = vmatpush.msra.mxu0 %v747
        %963 = vmatpush.msra.mxu0 %v739
        %964 = vmatpush.msra.mxu0 %v731
        %965 = vmatmul.f32.gmra.mxu0 %v807
        %v966 = vpop.f32.mrf.mxu0
        %v967 = vadd.f32 %v797, %v966
        %968 = vdwg.mxu0
        %v969 = vxor.u32 %v827, 2147483648
        %v970 = vxor.u32 %v847, 2147483648
        %v971 = vxor.u32 %v867, 2147483648
        %v972 = vxor.u32 %v887, 2147483648
        %v973 = vxor.u32 %v907, 2147483648
        %v974 = vxor.u32 %v927, 2147483648
        %v975 = vxor.u32 %v947, 2147483648
        %v976 = vxor.u32 %v967, 2147483648
        %v977 = vmul.f32 %v969, 1.442695
        %v978 = vpow.pop %v977
        %v979 = vmul.f32 %v970, 1.442695
        %v980 = vpow.pop %v979
        %v981 = vmul.f32 %v971, 1.442695
        %v982 = vpow.pop %v981
        %v983 = vmul.f32 %v972, 1.442695
        %v984 = vpow.pop %v983
        %v985 = vmul.f32 %v973, 1.442695
        %v986 = vpow.pop %v985
        %v987 = vmul.f32 %v974, 1.442695
        %v988 = vpow.pop %v987
        %v989 = vmul.f32 %v975, 1.442695
        %v990 = vpow.pop %v989
        %v991 = vmul.f32 %v976, 1.442695
        %v992 = vpow.pop %v991
        %v993 = vadd.f32 %v978, 1.0
        %v994 = vadd.f32 %v980, 1.0
        %v995 = vadd.f32 %v982, 1.0
        %v996 = vadd.f32 %v984, 1.0
        %v997 = vadd.f32 %v986, 1.0
        %v998 = vadd.f32 %v988, 1.0
        %v999 = vadd.f32 %v990, 1.0
        %v1000 = vadd.f32 %v992, 1.0
        %v1001 = vrcp.pop %v993
        %v1002 = vmul.f32 %v993, %v1001
        %v1003 = vsub.f32 1.0, %v1002
        %v1004 = vmul.f32 %v1001, %v1003
        %v1005 = vadd.f32 %v1001, %v1004
        %vm1006 = vweird.f32 %v993
        %vm1007 = vweird.f32 %v1001
        %vm1008 = vmor %vm1006, %vm1007
        %v1009 = vsel %vm1008, %v1001, %v1005
        %v1010 = vand.u32 2147483647, %v993
        %vm1011 = vcmp.eq.f32.partialorder %v1010, 8.507059e+37
        %v1012 = vand.u32 %v993, 2147483648
        %v1013 = vor.u32 1.1754944e-38, %v1012
        %v1014 = vsel %vm1011, %v1013, %v1009
        %v1015 = vmul.f32 1.0, %v1014
        %v1016 = vrcp.pop %v994
        %v1017 = vmul.f32 %v994, %v1016
        %v1018 = vsub.f32 1.0, %v1017
        %v1019 = vmul.f32 %v1016, %v1018
        %v1020 = vadd.f32 %v1016, %v1019
        %vm1021 = vweird.f32 %v994
        %vm1022 = vweird.f32 %v1016
        %vm1023 = vmor %vm1021, %vm1022
        %v1024 = vsel %vm1023, %v1016, %v1020
        %v1025 = vand.u32 2147483647, %v994
        %vm1026 = vcmp.eq.f32.partialorder %v1025, 8.507059e+37
        %v1027 = vand.u32 %v994, 2147483648
        %v1028 = vor.u32 1.1754944e-38, %v1027
        %v1029 = vsel %vm1026, %v1028, %v1024
        %v1030 = vmul.f32 1.0, %v1029
        %v1031 = vrcp.pop %v995
        %v1032 = vmul.f32 %v995, %v1031
        %v1033 = vsub.f32 1.0, %v1032
        %v1034 = vmul.f32 %v1031, %v1033
        %v1035 = vadd.f32 %v1031, %v1034
        %vm1036 = vweird.f32 %v995
        %vm1037 = vweird.f32 %v1031
        %vm1038 = vmor %vm1036, %vm1037
        %v1039 = vsel %vm1038, %v1031, %v1035
        %v1040 = vand.u32 2147483647, %v995
        %vm1041 = vcmp.eq.f32.partialorder %v1040, 8.507059e+37
        %v1042 = vand.u32 %v995, 2147483648
        %v1043 = vor.u32 1.1754944e-38, %v1042
        %v1044 = vsel %vm1041, %v1043, %v1039
        %v1045 = vmul.f32 1.0, %v1044
        %v1046 = vrcp.pop %v996
        %v1047 = vmul.f32 %v996, %v1046
        %v1048 = vsub.f32 1.0, %v1047
        %v1049 = vmul.f32 %v1046, %v1048
        %v1050 = vadd.f32 %v1046, %v1049
        %vm1051 = vweird.f32 %v996
        %vm1052 = vweird.f32 %v1046
        %vm1053 = vmor %vm1051, %vm1052
        %v1054 = vsel %vm1053, %v1046, %v1050
        %v1055 = vand.u32 2147483647, %v996
        %vm1056 = vcmp.eq.f32.partialorder %v1055, 8.507059e+37
        %v1057 = vand.u32 %v996, 2147483648
        %v1058 = vor.u32 1.1754944e-38, %v1057
        %v1059 = vsel %vm1056, %v1058, %v1054
        %v1060 = vmul.f32 1.0, %v1059
        %v1061 = vrcp.pop %v997
        %v1062 = vmul.f32 %v997, %v1061
        %v1063 = vsub.f32 1.0, %v1062
        %v1064 = vmul.f32 %v1061, %v1063
        %v1065 = vadd.f32 %v1061, %v1064
        %vm1066 = vweird.f32 %v997
        %vm1067 = vweird.f32 %v1061
        %vm1068 = vmor %vm1066, %vm1067
        %v1069 = vsel %vm1068, %v1061, %v1065
        %v1070 = vand.u32 2147483647, %v997
        %vm1071 = vcmp.eq.f32.partialorder %v1070, 8.507059e+37
        %v1072 = vand.u32 %v997, 2147483648
        %v1073 = vor.u32 1.1754944e-38, %v1072
        %v1074 = vsel %vm1071, %v1073, %v1069
        %v1075 = vmul.f32 1.0, %v1074
        %v1076 = vrcp.pop %v998
        %v1077 = vmul.f32 %v998, %v1076
        %v1078 = vsub.f32 1.0, %v1077
        %v1079 = vmul.f32 %v1076, %v1078
        %v1080 = vadd.f32 %v1076, %v1079
        %vm1081 = vweird.f32 %v998
        %vm1082 = vweird.f32 %v1076
        %vm1083 = vmor %vm1081, %vm1082
        %v1084 = vsel %vm1083, %v1076, %v1080
        %v1085 = vand.u32 2147483647, %v998
        %vm1086 = vcmp.eq.f32.partialorder %v1085, 8.507059e+37
        %v1087 = vand.u32 %v998, 2147483648
        %v1088 = vor.u32 1.1754944e-38, %v1087
        %v1089 = vsel %vm1086, %v1088, %v1084
        %v1090 = vmul.f32 1.0, %v1089
        %v1091 = vrcp.pop %v999
        %v1092 = vmul.f32 %v999, %v1091
        %v1093 = vsub.f32 1.0, %v1092
        %v1094 = vmul.f32 %v1091, %v1093
        %v1095 = vadd.f32 %v1091, %v1094
        %vm1096 = vweird.f32 %v999
        %vm1097 = vweird.f32 %v1091
        %vm1098 = vmor %vm1096, %vm1097
        %v1099 = vsel %vm1098, %v1091, %v1095
        %v1100 = vand.u32 2147483647, %v999
        %vm1101 = vcmp.eq.f32.partialorder %v1100, 8.507059e+37
        %v1102 = vand.u32 %v999, 2147483648
        %v1103 = vor.u32 1.1754944e-38, %v1102
        %v1104 = vsel %vm1101, %v1103, %v1099
        %v1105 = vmul.f32 1.0, %v1104
        %v1106 = vrcp.pop %v1000
        %v1107 = vmul.f32 %v1000, %v1106
        %v1108 = vsub.f32 1.0, %v1107
        %v1109 = vmul.f32 %v1106, %v1108
        %v1110 = vadd.f32 %v1106, %v1109
        %vm1111 = vweird.f32 %v1000
        %vm1112 = vweird.f32 %v1106
        %vm1113 = vmor %vm1111, %vm1112
        %v1114 = vsel %vm1113, %v1106, %v1110
        %v1115 = vand.u32 2147483647, %v1000
        %vm1116 = vcmp.eq.f32.partialorder %v1115, 8.507059e+37
        %v1117 = vand.u32 %v1000, 2147483648
        %v1118 = vor.u32 1.1754944e-38, %v1117
        %v1119 = vsel %vm1116, %v1118, %v1114
        %v1120 = vmul.f32 1.0, %v1119
        %v1121 = vld [vmem:[#allocation19] sm:$0xff]
        %v1122 = vld [vmem:[#allocation19 + $0x8] sm:$0xff]
        %v1123 = vld [vmem:[#allocation19 + $0x10] sm:$0xff]
        %v1124 = vld [vmem:[#allocation19 + $0x18] sm:$0xff]
        %v1125 = vld [vmem:[#allocation19 + $0x20] sm:$0xff]
        %v1126 = vld [vmem:[#allocation19 + $0x28] sm:$0xff]
        %v1127 = vld [vmem:[#allocation19 + $0x30] sm:$0xff]
        %v1128 = vld [vmem:[#allocation19 + $0x38] sm:$0xff]
        %v1129 = vld [vmem:[#allocation19 + $0x40] sm:$0xff]
        %v1130 = vld [vmem:[#allocation19 + $0x48] sm:$0xff]
        %v1131 = vld [vmem:[#allocation19 + $0x50] sm:$0xff]
        %v1132 = vld [vmem:[#allocation19 + $0x58] sm:$0xff]
        %v1133 = vld [vmem:[#allocation19 + $0x60] sm:$0xff]
        %v1134 = vld [vmem:[#allocation19 + $0x68] sm:$0xff]
        %v1135 = vld [vmem:[#allocation19 + $0x70] sm:$0xff]
        %v1136 = vld [vmem:[#allocation19 + $0x78] sm:$0xff]
        %v1137 = vld [vmem:[#allocation19 + $0x80] sm:$0xff]
        %v1138 = vld [vmem:[#allocation19 + $0x88] sm:$0xff]
        %v1139 = vld [vmem:[#allocation19 + $0x90] sm:$0xff]
        %v1140 = vld [vmem:[#allocation19 + $0x98] sm:$0xff]
        %v1141 = vld [vmem:[#allocation19 + $0xa0] sm:$0xff]
        %v1142 = vld [vmem:[#allocation19 + $0xa8] sm:$0xff]
        %v1143 = vld [vmem:[#allocation19 + $0xb0] sm:$0xff]
        %v1144 = vld [vmem:[#allocation19 + $0xb8] sm:$0xff]
        %v1145 = vld [vmem:[#allocation19 + $0xc0] sm:$0xff]
        %v1146 = vld [vmem:[#allocation19 + $0xc8] sm:$0xff]
        %v1147 = vld [vmem:[#allocation19 + $0xd0] sm:$0xff]
        %v1148 = vld [vmem:[#allocation19 + $0xd8] sm:$0xff]
        %v1149 = vld [vmem:[#allocation19 + $0xe0] sm:$0xff]
        %v1150 = vld [vmem:[#allocation19 + $0xe8] sm:$0xff]
        %v1151 = vld [vmem:[#allocation19 + $0xf0] sm:$0xff]
        %v1152 = vld [vmem:[#allocation19 + $0xf8] sm:$0xff]
        %v1153 = vld [vmem:[#allocation19 + $0x100] sm:$0xff]
        %v1154 = vld [vmem:[#allocation19 + $0x108] sm:$0xff]
        %v1155 = vld [vmem:[#allocation19 + $0x110] sm:$0xff]
        %v1156 = vld [vmem:[#allocation19 + $0x118] sm:$0xff]
        %v1157 = vld [vmem:[#allocation19 + $0x120] sm:$0xff]
        %v1158 = vld [vmem:[#allocation19 + $0x128] sm:$0xff]
        %v1159 = vld [vmem:[#allocation19 + $0x130] sm:$0xff]
        %v1160 = vld [vmem:[#allocation19 + $0x138] sm:$0xff]
        %v1161 = vld [vmem:[#allocation19 + $0x140] sm:$0xff]
        %v1162 = vld [vmem:[#allocation19 + $0x148] sm:$0xff]
        %v1163 = vld [vmem:[#allocation19 + $0x150] sm:$0xff]
        %v1164 = vld [vmem:[#allocation19 + $0x158] sm:$0xff]
        %v1165 = vld [vmem:[#allocation19 + $0x160] sm:$0xff]
        %v1166 = vld [vmem:[#allocation19 + $0x168] sm:$0xff]
        %v1167 = vld [vmem:[#allocation19 + $0x170] sm:$0xff]
        %v1168 = vld [vmem:[#allocation19 + $0x178] sm:$0xff]
        %v1169 = vld [vmem:[#allocation19 + $0x180] sm:$0xff]
        %v1170 = vld [vmem:[#allocation19 + $0x188] sm:$0xff]
        %v1171 = vld [vmem:[#allocation19 + $0x190] sm:$0xff]
        %v1172 = vld [vmem:[#allocation19 + $0x198] sm:$0xff]
        %v1173 = vld [vmem:[#allocation19 + $0x1a0] sm:$0xff]
        %v1174 = vld [vmem:[#allocation19 + $0x1a8] sm:$0xff]
        %v1175 = vld [vmem:[#allocation19 + $0x1b0] sm:$0xff]
        %v1176 = vld [vmem:[#allocation19 + $0x1b8] sm:$0xff]
        %v1177 = vld [vmem:[#allocation19 + $0x1c0] sm:$0xff]
        %v1178 = vld [vmem:[#allocation19 + $0x1c8] sm:$0xff]
        %v1179 = vld [vmem:[#allocation19 + $0x1d0] sm:$0xff]
        %v1180 = vld [vmem:[#allocation19 + $0x1d8] sm:$0xff]
        %v1181 = vld [vmem:[#allocation19 + $0x1e0] sm:$0xff]
        %v1182 = vld [vmem:[#allocation19 + $0x1e8] sm:$0xff]
        %v1183 = vld [vmem:[#allocation19 + $0x1f0] sm:$0xff]
        %v1184 = vld [vmem:[#allocation19 + $0x1f8] sm:$0xff]
        %v1185 = vld [vmem:[#allocation21] sm:$0xff]
        %1186 = vrot.lane.b32.xlu0 %v723, 64
        %v1187 = vpop.permute.xlu0 %1186
        %v1189 = vperm.slane %v1185, 0
        %v1190 = vperm.slane %v1185, 1
        %v1191 = vperm.slane %v1185, 2
        %v1192 = vperm.slane %v1185, 3
        %v1193 = vperm.slane %v1185, 4
        %v1194 = vperm.slane %v1185, 5
        %v1195 = vperm.slane %v1185, 6
        %v1196 = vperm.slane %v1185, 7
        %v1205 = vsel %vm661, %v1187, 0
        %1207 = vmatpush.msra.mxu0 0.0
        %1208 = vmatpush.msra.mxu0 0.0
        %1209 = vmatpush.msra.mxu0 0.0
        %1210 = vmatpush.msra.mxu0 0.0
        %1211 = vmatpush.msra.mxu0 0.0
        %1212 = vmatpush.msra.mxu0 0.0
        %1213 = vmatpush.msra.mxu0 0.0
        %1214 = vmatpush.msra.mxu0 0.0
        %1215 = vmatpush.msra.mxu0 %v1177
        %1216 = vmatpush.msra.mxu0 %v1169
        %1217 = vmatpush.msra.mxu0 %v1161
        %1218 = vmatpush.msra.mxu0 %v1153
        %1219 = vmatpush.msra.mxu0 %v1145
        %1220 = vmatpush.msra.mxu0 %v1137
        %1221 = vmatpush.msra.mxu0 %v1129
        %1222 = vmatpush.msra.mxu0 %v1121
        %1223 = vmatmul.f32.gmra.mxu0 %v1205
        %v1224 = vpop.f32.mrf.mxu0
        %v1225 = vadd.f32 %v1189, %v1224
        %1226 = vdwg.mxu0
        %1227 = vmatpush.msra.mxu0 0.0
        %1228 = vmatpush.msra.mxu0 0.0
        %1229 = vmatpush.msra.mxu0 0.0
        %1230 = vmatpush.msra.mxu0 0.0
        %1231 = vmatpush.msra.mxu0 0.0
        %1232 = vmatpush.msra.mxu0 0.0
        %1233 = vmatpush.msra.mxu0 0.0
        %1234 = vmatpush.msra.mxu0 0.0
        %1235 = vmatpush.msra.mxu0 %v1178
        %1236 = vmatpush.msra.mxu0 %v1170
        %1237 = vmatpush.msra.mxu0 %v1162
        %1238 = vmatpush.msra.mxu0 %v1154
        %1239 = vmatpush.msra.mxu0 %v1146
        %1240 = vmatpush.msra.mxu0 %v1138
        %1241 = vmatpush.msra.mxu0 %v1130
        %1242 = vmatpush.msra.mxu0 %v1122
        %1243 = vmatmul.f32.gmra.mxu0 %v1205
        %v1244 = vpop.f32.mrf.mxu0
        %v1245 = vadd.f32 %v1190, %v1244
        %1246 = vdwg.mxu0
        %1247 = vmatpush.msra.mxu0 0.0
        %1248 = vmatpush.msra.mxu0 0.0
        %1249 = vmatpush.msra.mxu0 0.0
        %1250 = vmatpush.msra.mxu0 0.0
        %1251 = vmatpush.msra.mxu0 0.0
        %1252 = vmatpush.msra.mxu0 0.0
        %1253 = vmatpush.msra.mxu0 0.0
        %1254 = vmatpush.msra.mxu0 0.0
        %1255 = vmatpush.msra.mxu0 %v1179
        %1256 = vmatpush.msra.mxu0 %v1171
        %1257 = vmatpush.msra.mxu0 %v1163
        %1258 = vmatpush.msra.mxu0 %v1155
        %1259 = vmatpush.msra.mxu0 %v1147
        %1260 = vmatpush.msra.mxu0 %v1139
        %1261 = vmatpush.msra.mxu0 %v1131
        %1262 = vmatpush.msra.mxu0 %v1123
        %1263 = vmatmul.f32.gmra.mxu0 %v1205
        %v1264 = vpop.f32.mrf.mxu0
        %v1265 = vadd.f32 %v1191, %v1264
        %1266 = vdwg.mxu0
        %1267 = vmatpush.msra.mxu0 0.0
        %1268 = vmatpush.msra.mxu0 0.0
        %1269 = vmatpush.msra.mxu0 0.0
        %1270 = vmatpush.msra.mxu0 0.0
        %1271 = vmatpush.msra.mxu0 0.0
        %1272 = vmatpush.msra.mxu0 0.0
        %1273 = vmatpush.msra.mxu0 0.0
        %1274 = vmatpush.msra.mxu0 0.0
        %1275 = vmatpush.msra.mxu0 %v1180
        %1276 = vmatpush.msra.mxu0 %v1172
        %1277 = vmatpush.msra.mxu0 %v1164
        %1278 = vmatpush.msra.mxu0 %v1156
        %1279 = vmatpush.msra.mxu0 %v1148
        %1280 = vmatpush.msra.mxu0 %v1140
        %1281 = vmatpush.msra.mxu0 %v1132
        %1282 = vmatpush.msra.mxu0 %v1124
        %1283 = vmatmul.f32.gmra.mxu0 %v1205
        %v1284 = vpop.f32.mrf.mxu0
        %v1285 = vadd.f32 %v1192, %v1284
        %1286 = vdwg.mxu0
        %1287 = vmatpush.msra.mxu0 0.0
        %1288 = vmatpush.msra.mxu0 0.0
        %1289 = vmatpush.msra.mxu0 0.0
        %1290 = vmatpush.msra.mxu0 0.0
        %1291 = vmatpush.msra.mxu0 0.0
        %1292 = vmatpush.msra.mxu0 0.0
        %1293 = vmatpush.msra.mxu0 0.0
        %1294 = vmatpush.msra.mxu0 0.0
        %1295 = vmatpush.msra.mxu0 %v1181
        %1296 = vmatpush.msra.mxu0 %v1173
        %1297 = vmatpush.msra.mxu0 %v1165
        %1298 = vmatpush.msra.mxu0 %v1157
        %1299 = vmatpush.msra.mxu0 %v1149
        %1300 = vmatpush.msra.mxu0 %v1141
        %1301 = vmatpush.msra.mxu0 %v1133
        %1302 = vmatpush.msra.mxu0 %v1125
        %1303 = vmatmul.f32.gmra.mxu0 %v1205
        %v1304 = vpop.f32.mrf.mxu0
        %v1305 = vadd.f32 %v1193, %v1304
        %1306 = vdwg.mxu0
        %1307 = vmatpush.msra.mxu0 0.0
        %1308 = vmatpush.msra.mxu0 0.0
        %1309 = vmatpush.msra.mxu0 0.0
        %1310 = vmatpush.msra.mxu0 0.0
        %1311 = vmatpush.msra.mxu0 0.0
        %1312 = vmatpush.msra.mxu0 0.0
        %1313 = vmatpush.msra.mxu0 0.0
        %1314 = vmatpush.msra.mxu0 0.0
        %1315 = vmatpush.msra.mxu0 %v1182
        %1316 = vmatpush.msra.mxu0 %v1174
        %1317 = vmatpush.msra.mxu0 %v1166
        %1318 = vmatpush.msra.mxu0 %v1158
        %1319 = vmatpush.msra.mxu0 %v1150
        %1320 = vmatpush.msra.mxu0 %v1142
        %1321 = vmatpush.msra.mxu0 %v1134
        %1322 = vmatpush.msra.mxu0 %v1126
        %1323 = vmatmul.f32.gmra.mxu0 %v1205
        %v1324 = vpop.f32.mrf.mxu0
        %v1325 = vadd.f32 %v1194, %v1324
        %1326 = vdwg.mxu0
        %1327 = vmatpush.msra.mxu0 0.0
        %1328 = vmatpush.msra.mxu0 0.0
        %1329 = vmatpush.msra.mxu0 0.0
        %1330 = vmatpush.msra.mxu0 0.0
        %1331 = vmatpush.msra.mxu0 0.0
        %1332 = vmatpush.msra.mxu0 0.0
        %1333 = vmatpush.msra.mxu0 0.0
        %1334 = vmatpush.msra.mxu0 0.0
        %1335 = vmatpush.msra.mxu0 %v1183
        %1336 = vmatpush.msra.mxu0 %v1175
        %1337 = vmatpush.msra.mxu0 %v1167
        %1338 = vmatpush.msra.mxu0 %v1159
        %1339 = vmatpush.msra.mxu0 %v1151
        %1340 = vmatpush.msra.mxu0 %v1143
        %1341 = vmatpush.msra.mxu0 %v1135
        %1342 = vmatpush.msra.mxu0 %v1127
        %1343 = vmatmul.f32.gmra.mxu0 %v1205
        %v1344 = vpop.f32.mrf.mxu0
        %v1345 = vadd.f32 %v1195, %v1344
        %1346 = vdwg.mxu0
        %1347 = vmatpush.msra.mxu0 0.0
        %1348 = vmatpush.msra.mxu0 0.0
        %1349 = vmatpush.msra.mxu0 0.0
        %1350 = vmatpush.msra.mxu0 0.0
        %1351 = vmatpush.msra.mxu0 0.0
        %1352 = vmatpush.msra.mxu0 0.0
        %1353 = vmatpush.msra.mxu0 0.0
        %1354 = vmatpush.msra.mxu0 0.0
        %1355 = vmatpush.msra.mxu0 %v1184
        %1356 = vmatpush.msra.mxu0 %v1176
        %1357 = vmatpush.msra.mxu0 %v1168
        %1358 = vmatpush.msra.mxu0 %v1160
        %1359 = vmatpush.msra.mxu0 %v1152
        %1360 = vmatpush.msra.mxu0 %v1144
        %1361 = vmatpush.msra.mxu0 %v1136
        %1362 = vmatpush.msra.mxu0 %v1128
        %1363 = vmatmul.f32.gmra.mxu0 %v1205
        %v1364 = vpop.f32.mrf.mxu0
        %v1365 = vadd.f32 %v1196, %v1364
        %1366 = vdwg.mxu0
        %v1367 = vxor.u32 %v1225, 2147483648
        %v1368 = vxor.u32 %v1245, 2147483648
        %v1369 = vxor.u32 %v1265, 2147483648
        %v1370 = vxor.u32 %v1285, 2147483648
        %v1371 = vxor.u32 %v1305, 2147483648
        %v1372 = vxor.u32 %v1325, 2147483648
        %v1373 = vxor.u32 %v1345, 2147483648
        %v1374 = vxor.u32 %v1365, 2147483648
        %v1375 = vmul.f32 %v1367, 1.442695
        %v1376 = vpow.pop %v1375
        %v1377 = vmul.f32 %v1368, 1.442695
        %v1378 = vpow.pop %v1377
        %v1379 = vmul.f32 %v1369, 1.442695
        %v1380 = vpow.pop %v1379
        %v1381 = vmul.f32 %v1370, 1.442695
        %v1382 = vpow.pop %v1381
        %v1383 = vmul.f32 %v1371, 1.442695
        %v1384 = vpow.pop %v1383
        %v1385 = vmul.f32 %v1372, 1.442695
        %v1386 = vpow.pop %v1385
        %v1387 = vmul.f32 %v1373, 1.442695
        %v1388 = vpow.pop %v1387
        %v1389 = vmul.f32 %v1374, 1.442695
        %v1390 = vpow.pop %v1389
        %v1391 = vadd.f32 %v1376, 1.0
        %v1392 = vadd.f32 %v1378, 1.0
        %v1393 = vadd.f32 %v1380, 1.0
        %v1394 = vadd.f32 %v1382, 1.0
        %v1395 = vadd.f32 %v1384, 1.0
        %v1396 = vadd.f32 %v1386, 1.0
        %v1397 = vadd.f32 %v1388, 1.0
        %v1398 = vadd.f32 %v1390, 1.0
        %v1399 = vrcp.pop %v1391
        %v1400 = vmul.f32 %v1391, %v1399
        %v1401 = vsub.f32 1.0, %v1400
        %v1402 = vmul.f32 %v1399, %v1401
        %v1403 = vadd.f32 %v1399, %v1402
        %vm1404 = vweird.f32 %v1391
        %vm1405 = vweird.f32 %v1399
        %vm1406 = vmor %vm1404, %vm1405
        %v1407 = vsel %vm1406, %v1399, %v1403
        %v1408 = vand.u32 2147483647, %v1391
        %vm1409 = vcmp.eq.f32.partialorder %v1408, 8.507059e+37
        %v1410 = vand.u32 %v1391, 2147483648
        %v1411 = vor.u32 1.1754944e-38, %v1410
        %v1412 = vsel %vm1409, %v1411, %v1407
        %v1413 = vmul.f32 1.0, %v1412
        %v1414 = vrcp.pop %v1392
        %v1415 = vmul.f32 %v1392, %v1414
        %v1416 = vsub.f32 1.0, %v1415
        %v1417 = vmul.f32 %v1414, %v1416
        %v1418 = vadd.f32 %v1414, %v1417
        %vm1419 = vweird.f32 %v1392
        %vm1420 = vweird.f32 %v1414
        %vm1421 = vmor %vm1419, %vm1420
        %v1422 = vsel %vm1421, %v1414, %v1418
        %v1423 = vand.u32 2147483647, %v1392
        %vm1424 = vcmp.eq.f32.partialorder %v1423, 8.507059e+37
        %v1425 = vand.u32 %v1392, 2147483648
        %v1426 = vor.u32 1.1754944e-38, %v1425
        %v1427 = vsel %vm1424, %v1426, %v1422
        %v1428 = vmul.f32 1.0, %v1427
        %v1429 = vrcp.pop %v1393
        %v1430 = vmul.f32 %v1393, %v1429
        %v1431 = vsub.f32 1.0, %v1430
        %v1432 = vmul.f32 %v1429, %v1431
        %v1433 = vadd.f32 %v1429, %v1432
        %vm1434 = vweird.f32 %v1393
        %vm1435 = vweird.f32 %v1429
        %vm1436 = vmor %vm1434, %vm1435
        %v1437 = vsel %vm1436, %v1429, %v1433
        %v1438 = vand.u32 2147483647, %v1393
        %vm1439 = vcmp.eq.f32.partialorder %v1438, 8.507059e+37
        %v1440 = vand.u32 %v1393, 2147483648
        %v1441 = vor.u32 1.1754944e-38, %v1440
        %v1442 = vsel %vm1439, %v1441, %v1437
        %v1443 = vmul.f32 1.0, %v1442
        %v1444 = vrcp.pop %v1394
        %v1445 = vmul.f32 %v1394, %v1444
        %v1446 = vsub.f32 1.0, %v1445
        %v1447 = vmul.f32 %v1444, %v1446
        %v1448 = vadd.f32 %v1444, %v1447
        %vm1449 = vweird.f32 %v1394
        %vm1450 = vweird.f32 %v1444
        %vm1451 = vmor %vm1449, %vm1450
        %v1452 = vsel %vm1451, %v1444, %v1448
        %v1453 = vand.u32 2147483647, %v1394
        %vm1454 = vcmp.eq.f32.partialorder %v1453, 8.507059e+37
        %v1455 = vand.u32 %v1394, 2147483648
        %v1456 = vor.u32 1.1754944e-38, %v1455
        %v1457 = vsel %vm1454, %v1456, %v1452
        %v1458 = vmul.f32 1.0, %v1457
        %v1459 = vrcp.pop %v1395
        %v1460 = vmul.f32 %v1395, %v1459
        %v1461 = vsub.f32 1.0, %v1460
        %v1462 = vmul.f32 %v1459, %v1461
        %v1463 = vadd.f32 %v1459, %v1462
        %vm1464 = vweird.f32 %v1395
        %vm1465 = vweird.f32 %v1459
        %vm1466 = vmor %vm1464, %vm1465
        %v1467 = vsel %vm1466, %v1459, %v1463
        %v1468 = vand.u32 2147483647, %v1395
        %vm1469 = vcmp.eq.f32.partialorder %v1468, 8.507059e+37
        %v1470 = vand.u32 %v1395, 2147483648
        %v1471 = vor.u32 1.1754944e-38, %v1470
        %v1472 = vsel %vm1469, %v1471, %v1467
        %v1473 = vmul.f32 1.0, %v1472
        %v1474 = vrcp.pop %v1396
        %v1475 = vmul.f32 %v1396, %v1474
        %v1476 = vsub.f32 1.0, %v1475
        %v1477 = vmul.f32 %v1474, %v1476
        %v1478 = vadd.f32 %v1474, %v1477
        %vm1479 = vweird.f32 %v1396
        %vm1480 = vweird.f32 %v1474
        %vm1481 = vmor %vm1479, %vm1480
        %v1482 = vsel %vm1481, %v1474, %v1478
        %v1483 = vand.u32 2147483647, %v1396
        %vm1484 = vcmp.eq.f32.partialorder %v1483, 8.507059e+37
        %v1485 = vand.u32 %v1396, 2147483648
        %v1486 = vor.u32 1.1754944e-38, %v1485
        %v1487 = vsel %vm1484, %v1486, %v1482
        %v1488 = vmul.f32 1.0, %v1487
        %v1489 = vrcp.pop %v1397
        %v1490 = vmul.f32 %v1397, %v1489
        %v1491 = vsub.f32 1.0, %v1490
        %v1492 = vmul.f32 %v1489, %v1491
        %v1493 = vadd.f32 %v1489, %v1492
        %vm1494 = vweird.f32 %v1397
        %vm1495 = vweird.f32 %v1489
        %vm1496 = vmor %vm1494, %vm1495
        %v1497 = vsel %vm1496, %v1489, %v1493
        %v1498 = vand.u32 2147483647, %v1397
        %vm1499 = vcmp.eq.f32.partialorder %v1498, 8.507059e+37
        %v1500 = vand.u32 %v1397, 2147483648
        %v1501 = vor.u32 1.1754944e-38, %v1500
        %v1502 = vsel %vm1499, %v1501, %v1497
        %v1503 = vmul.f32 1.0, %v1502
        %v1504 = vrcp.pop %v1398
        %v1505 = vmul.f32 %v1398, %v1504
        %v1506 = vsub.f32 1.0, %v1505
        %v1507 = vmul.f32 %v1504, %v1506
        %v1508 = vadd.f32 %v1504, %v1507
        %vm1509 = vweird.f32 %v1398
        %vm1510 = vweird.f32 %v1504
        %vm1511 = vmor %vm1509, %vm1510
        %v1512 = vsel %vm1511, %v1504, %v1508
        %v1513 = vand.u32 2147483647, %v1398
        %vm1514 = vcmp.eq.f32.partialorder %v1513, 8.507059e+37
        %v1515 = vand.u32 %v1398, 2147483648
        %v1516 = vor.u32 1.1754944e-38, %v1515
        %v1517 = vsel %vm1514, %v1516, %v1512
        %v1518 = vmul.f32 1.0, %v1517
        %vm1519 = vcmask 516096
        %1520 = vst.msk [vmem:[#allocation2] sm:$0x1] %vm1519, %v1015
        %1521 = vst.msk [vmem:[#allocation3] sm:$0x1] %vm1519, %v1413
        %1523 = vrot.lane.b32.xlu0 %v1015, 64
        %v1524 = vpop.permute.xlu0 %1523
        %1526 = vst.msk [vmem:[#allocation2 + $0x1] sm:$0x1] %vm1519, %v1524
        %1528 = vrot.lane.b32.xlu0 %v1413, 64
        %v1529 = vpop.permute.xlu0 %1528
        %1531 = vst.msk [vmem:[#allocation3 + $0x1] sm:$0x1] %vm1519, %v1529
        %1532 = vst.msk [vmem:[#allocation2 + $0x2] sm:$0x1] %vm1519, %v1030
        %1533 = vst.msk [vmem:[#allocation3 + $0x2] sm:$0x1] %vm1519, %v1428
        %1535 = vrot.lane.b32.xlu0 %v1030, 64
        %v1536 = vpop.permute.xlu0 %1535
        %1538 = vst.msk [vmem:[#allocation2 + $0x3] sm:$0x1] %vm1519, %v1536
        %1540 = vrot.lane.b32.xlu0 %v1428, 64
        %v1541 = vpop.permute.xlu0 %1540
        %1543 = vst.msk [vmem:[#allocation3 + $0x3] sm:$0x1] %vm1519, %v1541
        %1544 = vst.msk [vmem:[#allocation2 + $0x4] sm:$0x1] %vm1519, %v1045
        %1545 = vst.msk [vmem:[#allocation3 + $0x4] sm:$0x1] %vm1519, %v1443
        %1547 = vrot.lane.b32.xlu0 %v1045, 64
        %v1548 = vpop.permute.xlu0 %1547
        %1550 = vst.msk [vmem:[#allocation2 + $0x5] sm:$0x1] %vm1519, %v1548
        %1552 = vrot.lane.b32.xlu0 %v1443, 64
        %v1553 = vpop.permute.xlu0 %1552
        %1555 = vst.msk [vmem:[#allocation3 + $0x5] sm:$0x1] %vm1519, %v1553
        %1556 = vst.msk [vmem:[#allocation2 + $0x6] sm:$0x1] %vm1519, %v1060
        %1557 = vst.msk [vmem:[#allocation3 + $0x6] sm:$0x1] %vm1519, %v1458
        %1559 = vrot.lane.b32.xlu0 %v1060, 64
        %v1560 = vpop.permute.xlu0 %1559
        %1562 = vst.msk [vmem:[#allocation2 + $0x7] sm:$0x1] %vm1519, %v1560
        %1564 = vrot.lane.b32.xlu0 %v1458, 64
        %v1565 = vpop.permute.xlu0 %1564
        %1567 = vst.msk [vmem:[#allocation3 + $0x7] sm:$0x1] %vm1519, %v1565
        %1568 = vst.msk [vmem:[#allocation2 + $0x8] sm:$0x1] %vm1519, %v1075
        %1569 = vst.msk [vmem:[#allocation3 + $0x8] sm:$0x1] %vm1519, %v1473
        %1571 = vrot.lane.b32.xlu0 %v1075, 64
        %v1572 = vpop.permute.xlu0 %1571
        %1574 = vst.msk [vmem:[#allocation2 + $0x9] sm:$0x1] %vm1519, %v1572
        %1576 = vrot.lane.b32.xlu0 %v1473, 64
        %v1577 = vpop.permute.xlu0 %1576
        %1579 = vst.msk [vmem:[#allocation3 + $0x9] sm:$0x1] %vm1519, %v1577
        %1580 = vst.msk [vmem:[#allocation2 + $0xa] sm:$0x1] %vm1519, %v1090
        %1581 = vst.msk [vmem:[#allocation3 + $0xa] sm:$0x1] %vm1519, %v1488
        %1583 = vrot.lane.b32.xlu0 %v1090, 64
        %v1584 = vpop.permute.xlu0 %1583
        %1586 = vst.msk [vmem:[#allocation2 + $0xb] sm:$0x1] %vm1519, %v1584
        %1588 = vrot.lane.b32.xlu0 %v1488, 64
        %v1589 = vpop.permute.xlu0 %1588
        %1591 = vst.msk [vmem:[#allocation3 + $0xb] sm:$0x1] %vm1519, %v1589
        %1592 = vst.msk [vmem:[#allocation2 + $0xc] sm:$0x1] %vm1519, %v1105
        %1593 = vst.msk [vmem:[#allocation3 + $0xc] sm:$0x1] %vm1519, %v1503
        %1595 = vrot.lane.b32.xlu0 %v1105, 64
        %v1596 = vpop.permute.xlu0 %1595
        %1598 = vst.msk [vmem:[#allocation2 + $0xd] sm:$0x1] %vm1519, %v1596
        %1600 = vrot.lane.b32.xlu0 %v1503, 64
        %v1601 = vpop.permute.xlu0 %1600
        %1603 = vst.msk [vmem:[#allocation3 + $0xd] sm:$0x1] %vm1519, %v1601
        %1604 = vst.msk [vmem:[#allocation2 + $0xe] sm:$0x1] %vm1519, %v1120
        %1605 = vst.msk [vmem:[#allocation3 + $0xe] sm:$0x1] %vm1519, %v1518
        %1607 = vrot.lane.b32.xlu0 %v1120, 64
        %v1608 = vpop.permute.xlu0 %1607
        %1610 = vst.msk [vmem:[#allocation2 + $0xf] sm:$0x1] %vm1519, %v1608
        %1612 = vrot.lane.b32.xlu0 %v1518, 64
        %v1613 = vpop.permute.xlu0 %1612
        %1615 = vst.msk [vmem:[#allocation3 + $0xf] sm:$0x1] %vm1519, %v1613
        %v1616 = vld [vmem:[#allocation2] sm:$0xff]
        %v1617 = vld [vmem:[#allocation2 + $0x8] sm:$0xff]
        %v1618 = vld [vmem:[#allocation3] sm:$0xff]
        %v1619 = vld [vmem:[#allocation3 + $0x8] sm:$0xff]
        %v1620 = vlaneseq
        %v1621 = vshrl.u32 %v1620, 7
        %v1622 = vadd.s32 %v1621, 8
        %v1623 = vadd.s32 %v1621, 16
        %v1624 = vadd.s32 %v1621, 24
        %v1625 = vadd.s32 %v1621, 32
        %v1626 = vadd.s32 %v1621, 40
        %v1627 = vadd.s32 %v1621, 48
        %v1628 = vadd.s32 %v1621, 56
        %v1629 = vlaneseq
        %v1630 = vand.u32 %v1629, 127
        %vm1631 = vcmp.eq.s32.totalorder %v1621, %v1630
        %vm1632 = vcmp.eq.s32.totalorder %v1622, %v1630
        %vm1633 = vcmp.eq.s32.totalorder %v1623, %v1630
        %vm1634 = vcmp.eq.s32.totalorder %v1624, %v1630
        %vm1635 = vcmp.eq.s32.totalorder %v1625, %v1630
        %vm1636 = vcmp.eq.s32.totalorder %v1626, %v1630
        %vm1637 = vcmp.eq.s32.totalorder %v1627, %v1630
        %vm1638 = vcmp.eq.s32.totalorder %v1628, %v1630
        %v1639 = vsel %vm1631, 1, 0
        %v1640 = vsel %vm1632, 1, 0
        %v1641 = vsel %vm1633, 1, 0
        %v1642 = vsel %vm1634, 1, 0
        %v1643 = vsel %vm1635, 1, 0
        %v1644 = vsel %vm1636, 1, 0
        %v1645 = vsel %vm1637, 1, 0
        %v1646 = vsel %vm1638, 1, 0
        %v1647 = vcvt.s32.f32 %v1639
        %v1648 = vcvt.s32.f32 %v1640
        %v1649 = vcvt.s32.f32 %v1641
        %v1650 = vcvt.s32.f32 %v1642
        %v1651 = vcvt.s32.f32 %v1643
        %v1652 = vcvt.s32.f32 %v1644
        %v1653 = vcvt.s32.f32 %v1645
        %v1654 = vcvt.s32.f32 %v1646
        %v1656 = vsel %vm661, %v1647, 0
        %v1659 = vsel %vm661, %v1648, 0
        %v1662 = vsel %vm661, %v1649, 0
        %v1665 = vsel %vm661, %v1650, 0
        %v1668 = vsel %vm661, %v1651, 0
        %v1671 = vsel %vm661, %v1652, 0
        %v1674 = vsel %vm661, %v1653, 0
        %v1677 = vsel %vm661, %v1654, 0
        %v1680 = vsel %vm661, %v1616, 0
        %v1683 = vsel %vm661, %v1617, 0
        %1685 = vmatpush.xpose.msra.mxu0 0.0
        %1686 = vmatpush.xpose.msra.mxu0 0.0
        %1687 = vmatpush.xpose.msra.mxu0 0.0
        %1688 = vmatpush.xpose.msra.mxu0 0.0
        %1689 = vmatpush.xpose.msra.mxu0 0.0
        %1690 = vmatpush.xpose.msra.mxu0 0.0
        %1691 = vmatpush.xpose.msra.mxu0 0.0
        %1692 = vmatpush.xpose.msra.mxu0 0.0
        %1693 = vmatpush.xpose.msra.mxu0 0.0
        %1694 = vmatpush.xpose.msra.mxu0 0.0
        %1695 = vmatpush.xpose.msra.mxu0 0.0
        %1696 = vmatpush.xpose.msra.mxu0 0.0
        %1697 = vmatpush.xpose.msra.mxu0 0.0
        %1698 = vmatpush.xpose.msra.mxu0 0.0
        %1699 = vmatpush.xpose.msra.mxu0 %v1683
        %1700 = vmatpush.xpose.msra.mxu0 %v1680
        %1701 = vmatmul.f32.gmra.mxu0 %v1656
        %v1702 = vpop.f32.mrf.mxu0
        %v1703 = vadd.f32 0.0, %v1702
        %1704 = vmatmul.f32.gmra.mxu0 %v1659
        %v1705 = vpop.f32.mrf.mxu0
        %v1706 = vadd.f32 0.0, %v1705
        %1707 = vmatmul.f32.gmra.mxu0 %v1662
        %v1708 = vpop.f32.mrf.mxu0
        %v1709 = vadd.f32 0.0, %v1708
        %1710 = vmatmul.f32.gmra.mxu0 %v1665
        %v1711 = vpop.f32.mrf.mxu0
        %v1712 = vadd.f32 0.0, %v1711
        %1713 = vmatmul.f32.gmra.mxu0 %v1668
        %v1714 = vpop.f32.mrf.mxu0
        %v1715 = vadd.f32 0.0, %v1714
        %1716 = vmatmul.f32.gmra.mxu0 %v1671
        %v1717 = vpop.f32.mrf.mxu0
        %v1718 = vadd.f32 0.0, %v1717
        %1719 = vmatmul.f32.gmra.mxu0 %v1674
        %v1720 = vpop.f32.mrf.mxu0
        %v1721 = vadd.f32 0.0, %v1720
        %1722 = vmatmul.f32.gmra.mxu0 %v1677
        %v1723 = vpop.f32.mrf.mxu0
        %v1724 = vadd.f32 0.0, %v1723
        %1725 = vdwg.mxu0
        %vm1726 = vcmask 130048
        %v1728 = vsel %vm1726, %v1618, 0
        %v1731 = vsel %vm1726, %v1619, 0
        %1733 = vmatpush.msra.mxu0 0.0
        %1734 = vmatpush.msra.mxu0 0.0
        %1735 = vmatpush.msra.mxu0 0.0
        %1736 = vmatpush.msra.mxu0 0.0
        %1737 = vmatpush.msra.mxu0 0.0
        %1738 = vmatpush.msra.mxu0 0.0
        %1739 = vmatpush.msra.mxu0 0.0
        %1740 = vmatpush.msra.mxu0 0.0
        %1741 = vmatpush.msra.mxu0 0.0
        %1742 = vmatpush.msra.mxu0 0.0
        %1743 = vmatpush.msra.mxu0 0.0
        %1744 = vmatpush.msra.mxu0 0.0
        %1745 = vmatpush.msra.mxu0 0.0
        %1746 = vmatpush.msra.mxu0 0.0
        %1747 = vmatpush.msra.mxu0 %v1617
        %1748 = vmatpush.msra.mxu0 %v1616
        %1749 = vmatmul.f32.gmra.mxu0 %v1728
        %v1750 = vpop.f32.mrf.mxu0
        %v1751 = vadd.f32 0.0, %v1750
        %1752 = vmatmul.f32.gmra.mxu0 %v1731
        %v1753 = vpop.f32.mrf.mxu0
        %v1754 = vadd.f32 0.0, %v1753
        %1755 = vdwg.mxu0
        %v1757 = vsel %vm1726, %v1703, 0
        %v1760 = vsel %vm1726, %v1706, 0
        %v1763 = vsel %vm1726, %v1709, 0
        %v1766 = vsel %vm1726, %v1712, 0
        %v1769 = vsel %vm1726, %v1715, 0
        %v1772 = vsel %vm1726, %v1718, 0
        %v1775 = vsel %vm1726, %v1721, 0
        %v1778 = vsel %vm1726, %v1724, 0
        %1780 = vmatpush.msra.mxu0 0.0
        %1781 = vmatpush.msra.mxu0 0.0
        %1782 = vmatpush.msra.mxu0 0.0
        %1783 = vmatpush.msra.mxu0 0.0
        %1784 = vmatpush.msra.mxu0 0.0
        %1785 = vmatpush.msra.mxu0 0.0
        %1786 = vmatpush.msra.mxu0 0.0
        %1787 = vmatpush.msra.mxu0 0.0
        %1788 = vmatpush.msra.mxu0 0.0
        %1789 = vmatpush.msra.mxu0 0.0
        %1790 = vmatpush.msra.mxu0 0.0
        %1791 = vmatpush.msra.mxu0 0.0
        %1792 = vmatpush.msra.mxu0 0.0
        %1793 = vmatpush.msra.mxu0 0.0
        %1794 = vmatpush.msra.mxu0 %v1754
        %1795 = vmatpush.msra.mxu0 %v1751
        %1796 = vmatmul.f32.gmra.mxu0 %v1757
        %v1797 = vpop.f32.mrf.mxu0
        %v1798 = vadd.f32 0.0, %v1797
        %1799 = vmatmul.f32.gmra.mxu0 %v1760
        %v1800 = vpop.f32.mrf.mxu0
        %v1801 = vadd.f32 0.0, %v1800
        %1802 = vmatmul.f32.gmra.mxu0 %v1763
        %v1803 = vpop.f32.mrf.mxu0
        %v1804 = vadd.f32 0.0, %v1803
        %1805 = vmatmul.f32.gmra.mxu0 %v1766
        %v1806 = vpop.f32.mrf.mxu0
        %v1807 = vadd.f32 0.0, %v1806
        %1808 = vmatmul.f32.gmra.mxu0 %v1769
        %v1809 = vpop.f32.mrf.mxu0
        %v1810 = vadd.f32 0.0, %v1809
        %1811 = vmatmul.f32.gmra.mxu0 %v1772
        %v1812 = vpop.f32.mrf.mxu0
        %v1813 = vadd.f32 0.0, %v1812
        %1814 = vmatmul.f32.gmra.mxu0 %v1775
        %v1815 = vpop.f32.mrf.mxu0
        %v1816 = vadd.f32 0.0, %v1815
        %1817 = vmatmul.f32.gmra.mxu0 %v1778
        %v1818 = vpop.f32.mrf.mxu0
        %v1819 = vadd.f32 0.0, %v1818
        %1820 = vdwg.mxu0
        %1821 = vst.msk [vmem:[%s590] sm:$0xff] %vm661, %v1798
        %1822 = vst.msk [vmem:[%s590 + $0x8] sm:$0xff] %vm661, %v1801
        %1823 = vst.msk [vmem:[%s590 + $0x10] sm:$0xff] %vm661, %v1804
        %1824 = vst.msk [vmem:[%s590 + $0x18] sm:$0xff] %vm661, %v1807
        %1825 = vst.msk [vmem:[%s590 + $0x20] sm:$0xff] %vm661, %v1810
        %1826 = vst.msk [vmem:[%s590 + $0x28] sm:$0xff] %vm661, %v1813
        %1827 = vst.msk [vmem:[%s590 + $0x30] sm:$0xff] %vm661, %v1816
        %1828 = vst.msk [vmem:[%s590 + $0x38] sm:$0xff] %vm661, %v1819
        %1829 = vrot.lane.b32.xlu0 %v1618, 112
        %v1830 = vpop.permute.xlu0 %1829
        %1831 = vrot.lane.b32.xlu0 %v1619, 112
        %v1832 = vpop.permute.xlu0 %1831
        %v1833 = vsel %vm1726, %v1830, 0
        %v1835 = vsel %vm1726, %v1832, 0
        %1837 = vmatpush.msra.mxu0 0.0
        %1838 = vmatpush.msra.mxu0 0.0
        %1839 = vmatpush.msra.mxu0 0.0
        %1840 = vmatpush.msra.mxu0 0.0
        %1841 = vmatpush.msra.mxu0 0.0
        %1842 = vmatpush.msra.mxu0 0.0
        %1843 = vmatpush.msra.mxu0 0.0
        %1844 = vmatpush.msra.mxu0 0.0
        %1845 = vmatpush.msra.mxu0 0.0
        %1846 = vmatpush.msra.mxu0 0.0
        %1847 = vmatpush.msra.mxu0 0.0
        %1848 = vmatpush.msra.mxu0 0.0
        %1849 = vmatpush.msra.mxu0 0.0
        %1850 = vmatpush.msra.mxu0 0.0
        %1851 = vmatpush.msra.mxu0 %v1617
        %1852 = vmatpush.msra.mxu0 %v1616
        %1853 = vmatmul.f32.gmra.mxu0 %v1833
        %v1854 = vpop.f32.mrf.mxu0
        %v1855 = vadd.f32 0.0, %v1854
        %1856 = vmatmul.f32.gmra.mxu0 %v1835
        %v1857 = vpop.f32.mrf.mxu0
        %v1858 = vadd.f32 0.0, %v1857
        %1859 = vdwg.mxu0
        %1860 = vmatpush.msra.mxu0 0.0
        %1861 = vmatpush.msra.mxu0 0.0
        %1862 = vmatpush.msra.mxu0 0.0
        %1863 = vmatpush.msra.mxu0 0.0
        %1864 = vmatpush.msra.mxu0 0.0
        %1865 = vmatpush.msra.mxu0 0.0
        %1866 = vmatpush.msra.mxu0 0.0
        %1867 = vmatpush.msra.mxu0 0.0
        %1868 = vmatpush.msra.mxu0 0.0
        %1869 = vmatpush.msra.mxu0 0.0
        %1870 = vmatpush.msra.mxu0 0.0
        %1871 = vmatpush.msra.mxu0 0.0
        %1872 = vmatpush.msra.mxu0 0.0
        %1873 = vmatpush.msra.mxu0 0.0
        %1874 = vmatpush.msra.mxu0 %v1858
        %1875 = vmatpush.msra.mxu0 %v1855
        %1876 = vmatmul.f32.gmra.mxu0 %v1757
        %v1877 = vpop.f32.mrf.mxu0
        %v1878 = vadd.f32 0.0, %v1877
        %1879 = vmatmul.f32.gmra.mxu0 %v1760
        %v1880 = vpop.f32.mrf.mxu0
        %v1881 = vadd.f32 0.0, %v1880
        %1882 = vmatmul.f32.gmra.mxu0 %v1763
        %v1883 = vpop.f32.mrf.mxu0
        %v1884 = vadd.f32 0.0, %v1883
        %1885 = vmatmul.f32.gmra.mxu0 %v1766
        %v1886 = vpop.f32.mrf.mxu0
        %v1887 = vadd.f32 0.0, %v1886
        %1888 = vmatmul.f32.gmra.mxu0 %v1769
        %v1889 = vpop.f32.mrf.mxu0
        %v1890 = vadd.f32 0.0, %v1889
        %1891 = vmatmul.f32.gmra.mxu0 %v1772
        %v1892 = vpop.f32.mrf.mxu0
        %v1893 = vadd.f32 0.0, %v1892
        %1894 = vmatmul.f32.gmra.mxu0 %v1775
        %v1895 = vpop.f32.mrf.mxu0
        %v1896 = vadd.f32 0.0, %v1895
        %1897 = vmatmul.f32.gmra.mxu0 %v1778
        %v1898 = vpop.f32.mrf.mxu0
        %v1899 = vadd.f32 0.0, %v1898
        %1900 = vdwg.mxu0
        %s1901 = scalar_lea.vmem %s590, 64 [#allocation22]
        %1902 = vst.msk [vmem:[%s1901] sm:$0xff] %vm661, %v1878
        %1903 = vst.msk [vmem:[%s1901 + $0x8] sm:$0xff] %vm661, %v1881
        %1904 = vst.msk [vmem:[%s1901 + $0x10] sm:$0xff] %vm661, %v1884
        %1905 = vst.msk [vmem:[%s1901 + $0x18] sm:$0xff] %vm661, %v1887
        %1906 = vst.msk [vmem:[%s1901 + $0x20] sm:$0xff] %vm661, %v1890
        %1907 = vst.msk [vmem:[%s1901 + $0x28] sm:$0xff] %vm661, %v1893
        %1908 = vst.msk [vmem:[%s1901 + $0x30] sm:$0xff] %vm661, %v1896
        %1909 = vst.msk [vmem:[%s1901 + $0x38] sm:$0xff] %vm661, %v1899
        %1910 = vrot.lane.b32.xlu0 %v1618, 96
        %v1911 = vpop.permute.xlu0 %1910
        %1912 = vrot.lane.b32.xlu0 %v1619, 96
        %v1913 = vpop.permute.xlu0 %1912
        %v1914 = vsel %vm1726, %v1911, 0
        %v1916 = vsel %vm1726, %v1913, 0
        %1918 = vmatpush.msra.mxu0 0.0
        %1919 = vmatpush.msra.mxu0 0.0
        %1920 = vmatpush.msra.mxu0 0.0
        %1921 = vmatpush.msra.mxu0 0.0
        %1922 = vmatpush.msra.mxu0 0.0
        %1923 = vmatpush.msra.mxu0 0.0
        %1924 = vmatpush.msra.mxu0 0.0
        %1925 = vmatpush.msra.mxu0 0.0
        %1926 = vmatpush.msra.mxu0 0.0
        %1927 = vmatpush.msra.mxu0 0.0
        %1928 = vmatpush.msra.mxu0 0.0
        %1929 = vmatpush.msra.mxu0 0.0
        %1930 = vmatpush.msra.mxu0 0.0
        %1931 = vmatpush.msra.mxu0 0.0
        %1932 = vmatpush.msra.mxu0 %v1617
        %1933 = vmatpush.msra.mxu0 %v1616
        %1934 = vmatmul.f32.gmra.mxu0 %v1914
        %v1935 = vpop.f32.mrf.mxu0
        %v1936 = vadd.f32 0.0, %v1935
        %1937 = vmatmul.f32.gmra.mxu0 %v1916
        %v1938 = vpop.f32.mrf.mxu0
        %v1939 = vadd.f32 0.0, %v1938
        %1940 = vdwg.mxu0
        %1941 = vmatpush.msra.mxu0 0.0
        %1942 = vmatpush.msra.mxu0 0.0
        %1943 = vmatpush.msra.mxu0 0.0
        %1944 = vmatpush.msra.mxu0 0.0
        %1945 = vmatpush.msra.mxu0 0.0
        %1946 = vmatpush.msra.mxu0 0.0
        %1947 = vmatpush.msra.mxu0 0.0
        %1948 = vmatpush.msra.mxu0 0.0
        %1949 = vmatpush.msra.mxu0 0.0
        %1950 = vmatpush.msra.mxu0 0.0
        %1951 = vmatpush.msra.mxu0 0.0
        %1952 = vmatpush.msra.mxu0 0.0
        %1953 = vmatpush.msra.mxu0 0.0
        %1954 = vmatpush.msra.mxu0 0.0
        %1955 = vmatpush.msra.mxu0 %v1939
        %1956 = vmatpush.msra.mxu0 %v1936
        %1957 = vmatmul.f32.gmra.mxu0 %v1757
        %v1958 = vpop.f32.mrf.mxu0
        %v1959 = vadd.f32 0.0, %v1958
        %1960 = vmatmul.f32.gmra.mxu0 %v1760
        %v1961 = vpop.f32.mrf.mxu0
        %v1962 = vadd.f32 0.0, %v1961
        %1963 = vmatmul.f32.gmra.mxu0 %v1763
        %v1964 = vpop.f32.mrf.mxu0
        %v1965 = vadd.f32 0.0, %v1964
        %1966 = vmatmul.f32.gmra.mxu0 %v1766
        %v1967 = vpop.f32.mrf.mxu0
        %v1968 = vadd.f32 0.0, %v1967
        %1969 = vmatmul.f32.gmra.mxu0 %v1769
        %v1970 = vpop.f32.mrf.mxu0
        %v1971 = vadd.f32 0.0, %v1970
        %1972 = vmatmul.f32.gmra.mxu0 %v1772
        %v1973 = vpop.f32.mrf.mxu0
        %v1974 = vadd.f32 0.0, %v1973
        %1975 = vmatmul.f32.gmra.mxu0 %v1775
        %v1976 = vpop.f32.mrf.mxu0
        %v1977 = vadd.f32 0.0, %v1976
        %1978 = vmatmul.f32.gmra.mxu0 %v1778
        %v1979 = vpop.f32.mrf.mxu0
        %v1980 = vadd.f32 0.0, %v1979
        %1981 = vdwg.mxu0
        %s1982 = scalar_lea.vmem %s590, 128 [#allocation22]
        %1983 = vst.msk [vmem:[%s1982] sm:$0xff] %vm661, %v1959
        %1984 = vst.msk [vmem:[%s1982 + $0x8] sm:$0xff] %vm661, %v1962
        %1985 = vst.msk [vmem:[%s1982 + $0x10] sm:$0xff] %vm661, %v1965
        %1986 = vst.msk [vmem:[%s1982 + $0x18] sm:$0xff] %vm661, %v1968
        %1987 = vst.msk [vmem:[%s1982 + $0x20] sm:$0xff] %vm661, %v1971
        %1988 = vst.msk [vmem:[%s1982 + $0x28] sm:$0xff] %vm661, %v1974
        %1989 = vst.msk [vmem:[%s1982 + $0x30] sm:$0xff] %vm661, %v1977
        %1990 = vst.msk [vmem:[%s1982 + $0x38] sm:$0xff] %vm661, %v1980
        %1991 = vrot.lane.b32.xlu0 %v1618, 80
        %v1992 = vpop.permute.xlu0 %1991
        %1993 = vrot.lane.b32.xlu0 %v1619, 80
        %v1994 = vpop.permute.xlu0 %1993
        %v1995 = vsel %vm1726, %v1992, 0
        %v1997 = vsel %vm1726, %v1994, 0
        %1999 = vmatpush.msra.mxu0 0.0
        %2000 = vmatpush.msra.mxu0 0.0
        %2001 = vmatpush.msra.mxu0 0.0
        %2002 = vmatpush.msra.mxu0 0.0
        %2003 = vmatpush.msra.mxu0 0.0
        %2004 = vmatpush.msra.mxu0 0.0
        %2005 = vmatpush.msra.mxu0 0.0
        %2006 = vmatpush.msra.mxu0 0.0
        %2007 = vmatpush.msra.mxu0 0.0
        %2008 = vmatpush.msra.mxu0 0.0
        %2009 = vmatpush.msra.mxu0 0.0
        %2010 = vmatpush.msra.mxu0 0.0
        %2011 = vmatpush.msra.mxu0 0.0
        %2012 = vmatpush.msra.mxu0 0.0
        %2013 = vmatpush.msra.mxu0 %v1617
        %2014 = vmatpush.msra.mxu0 %v1616
        %2015 = vmatmul.f32.gmra.mxu0 %v1995
        %v2016 = vpop.f32.mrf.mxu0
        %v2017 = vadd.f32 0.0, %v2016
        %2018 = vmatmul.f32.gmra.mxu0 %v1997
        %v2019 = vpop.f32.mrf.mxu0
        %v2020 = vadd.f32 0.0, %v2019
        %2021 = vdwg.mxu0
        %2022 = vmatpush.msra.mxu0 0.0
        %2023 = vmatpush.msra.mxu0 0.0
        %2024 = vmatpush.msra.mxu0 0.0
        %2025 = vmatpush.msra.mxu0 0.0
        %2026 = vmatpush.msra.mxu0 0.0
        %2027 = vmatpush.msra.mxu0 0.0
        %2028 = vmatpush.msra.mxu0 0.0
        %2029 = vmatpush.msra.mxu0 0.0
        %2030 = vmatpush.msra.mxu0 0.0
        %2031 = vmatpush.msra.mxu0 0.0
        %2032 = vmatpush.msra.mxu0 0.0
        %2033 = vmatpush.msra.mxu0 0.0
        %2034 = vmatpush.msra.mxu0 0.0
        %2035 = vmatpush.msra.mxu0 0.0
        %2036 = vmatpush.msra.mxu0 %v2020
        %2037 = vmatpush.msra.mxu0 %v2017
        %2038 = vmatmul.f32.gmra.mxu0 %v1757
        %v2039 = vpop.f32.mrf.mxu0
        %v2040 = vadd.f32 0.0, %v2039
        %2041 = vmatmul.f32.gmra.mxu0 %v1760
        %v2042 = vpop.f32.mrf.mxu0
        %v2043 = vadd.f32 0.0, %v2042
        %2044 = vmatmul.f32.gmra.mxu0 %v1763
        %v2045 = vpop.f32.mrf.mxu0
        %v2046 = vadd.f32 0.0, %v2045
        %2047 = vmatmul.f32.gmra.mxu0 %v1766
        %v2048 = vpop.f32.mrf.mxu0
        %v2049 = vadd.f32 0.0, %v2048
        %2050 = vmatmul.f32.gmra.mxu0 %v1769
        %v2051 = vpop.f32.mrf.mxu0
        %v2052 = vadd.f32 0.0, %v2051
        %2053 = vmatmul.f32.gmra.mxu0 %v1772
        %v2054 = vpop.f32.mrf.mxu0
        %v2055 = vadd.f32 0.0, %v2054
        %2056 = vmatmul.f32.gmra.mxu0 %v1775
        %v2057 = vpop.f32.mrf.mxu0
        %v2058 = vadd.f32 0.0, %v2057
        %2059 = vmatmul.f32.gmra.mxu0 %v1778
        %v2060 = vpop.f32.mrf.mxu0
        %v2061 = vadd.f32 0.0, %v2060
        %2062 = vdwg.mxu0
        %s2063 = scalar_lea.vmem %s590, 192 [#allocation22]
        %2064 = vst.msk [vmem:[%s2063] sm:$0xff] %vm661, %v2040
        %2065 = vst.msk [vmem:[%s2063 + $0x8] sm:$0xff] %vm661, %v2043
        %2066 = vst.msk [vmem:[%s2063 + $0x10] sm:$0xff] %vm661, %v2046
        %2067 = vst.msk [vmem:[%s2063 + $0x18] sm:$0xff] %vm661, %v2049
        %2068 = vst.msk [vmem:[%s2063 + $0x20] sm:$0xff] %vm661, %v2052
        %2069 = vst.msk [vmem:[%s2063 + $0x28] sm:$0xff] %vm661, %v2055
        %2070 = vst.msk [vmem:[%s2063 + $0x30] sm:$0xff] %vm661, %v2058
        %2071 = vst.msk [vmem:[%s2063 + $0x38] sm:$0xff] %vm661, %v2061
        %s2072 = sand.u32 %s314, 1
        %s2073 = scalar_lea.sflag [#allocation6], %s2072
        %s2074 = sand.u32 %s314, 1
        %s2075 = smul.addr %s2074, 256
        %s2076 = scalar_lea.vmem [#allocation22], %s2075
        // Predicated region
        $region117: #{tpu_custom_call.1} parent=71 // pred_check
          %p2077 = pneg %p324
        $region118: #{tpu_custom_call.1} parent=71 // pred_check_branch
          %2079 = sbr.rel (%p2077) target = $region120
        $region119: #{tpu_custom_call.1} parent=71 // pred_region
          %2081 = vsyncadd %s2073, 0
          %s2082 = smul.addr %s33, 32
          %s2083 = smul.addr %s2082, 8
          %s2084 = scalar_lea.hbm %s13, %s2083
          %s2085 = sshll.u32 %s2076, 4
          %s2086 = int_to_ptr.vmem [resolvable:$true] %s2085
          %s2087 = sshll.u32 %s2084, 4
          %s2088 = int_to_ptr.hbm [resolvable:$true] %s2087
          %2093 = dma.vmem_to_hbm [thread:$0]  %s2086, 4096, %s2088, %s2073, 128, 128, 8
        $region120: #{tpu_custom_call.1} parent=71 // pred_fallthru
          _
      $region72: #{tpu_custom_call.1} parent=5 // pred_fallthru
        _
      %p2094 = scmp.le.s32.totalorder 2, %s28
      // Predicated region
      $region121: #{tpu_custom_call.1} parent=5 // pred_check
        %p2095 = pneg %p2094
      $region122: #{tpu_custom_call.1} parent=5 // pred_check_branch
        %2097 = sbr.rel (%p2095) target = $region124
      $region123: #{tpu_custom_call.1} parent=5 // pred_region
        %s2098 = ssub.s32 %s28, 2
        // Predicated region
        $region125: #{tpu_custom_call.1} parent=123 // pred_check
          %p2099 = pneg %p330
        $region126: #{tpu_custom_call.1} parent=123 // pred_check_branch
          %2101 = sbr.rel (%p2099) target = $region128
        $region127: #{tpu_custom_call.1} parent=123 // pred_region
          %s2102 = sand.u32 %s315, 1
          %s2103 = scalar_lea.sflag [#allocation6], %s2102
          %s2104 = sand.u32 %s315, 1
          %s2105 = smul.addr %s2104, 256
          %s2106 = scalar_lea.vmem [#allocation22], %s2105
          %2108 = dma.done %s2103, 4096
        $region128: #{tpu_custom_call.1} parent=123 // pred_fallthru
          _
      $region124: #{tpu_custom_call.1} parent=5 // pred_fallthru
        _
    $region6: #{tpu_custom_call.1} parent=1 // loop_footer
      %s32 = sadd.s32 1, %s28
    $region7: #{tpu_custom_call.1} parent=1 // loop_footer_branch
      %27 = sbr.rel target = $region3
    $region8: #{tpu_custom_call.1} parent=1 // loop_exit
      _
    %2109 = vsyncpa [#allocation5], 1
    %s2110 = scalar_lea.sflag [#allocation5], 1
    %2111 = vsyncpa %s2110, 1
    %2112 = vsyncpa [#allocation8], 1
    %2113 = vsyncpa [#allocation11], 1
    %2114 = vsyncpa [#allocation14], 1
    %2115 = vsyncpa [#allocation17], 1
    %2116 = vsyncpa [#allocation20], 1
    %2117 = vsyncpa [#allocation6], 1
    %s2118 = scalar_lea.sflag [#allocation6], 1
    %2119 = vsyncpa %s2118, 1

</llo_original>
